<compile_context>
chip_gen: v7x
topology: tpu7x:2x2x1
jax: 0.10.0
libtpu: 0.0.40
codegen_flags: <defaults>
</compile_context>

<pallas_src>
import functools

import jax
import jax.numpy as jnp
from jax.experimental import pallas as pl
from jax.experimental.pallas import tpu as pltpu

NEG_SLOPE = 0.2            # PyG GATv2Conv default negative_slope
MASK_BIAS = 1e30           # additive mask magnitude for non-edges
MXU_DTYPE = jnp.bfloat16   # MXU / e-slab operand dtype; softmax & accumulation stay f32
# TODO(synk): on v5e (no bf16 VALU) keep the e slab in f32 and only cast at MXU operands.


def _gatv2_conv_kernel(xs_ref, xd_ref, maskb_ref, wl_ref, bl_ref, wr_ref, br_ref,
                       att_ref, bias_ref, out_ref, *, heads, out_c, apply_relu):
    """One GATv2Conv layer for one tile of target rows (all source nodes visible)."""
    c = out_c

    # Projections: bf16 MXU operands, f32 accumulate.  xl covers ALL sources (every row
    # tile needs them); xr only this tile's target rows.
    xl = jnp.dot(xs_ref[...].astype(MXU_DTYPE), wl_ref[...],
                 preferred_element_type=jnp.float32) + bl_ref[...]            # [N, HC]
    xr = jnp.dot(xd_ref[...].astype(MXU_DTYPE), wr_ref[...],
                 preferred_element_type=jnp.float32) + br_ref[...]            # [TM, HC]

    xl_b = xl.astype(MXU_DTYPE)                 # aggregation RHS              [N, HC]
    xl_t = xl.T.astype(MXU_DTYPE)               # sources j on the lane axis   [HC, N]
    xr_b = xr.astype(MXU_DTYPE)                 #                              [TM, HC]
    maskb = maskb_ref[...].astype(jnp.float32)  # additive -1e30/0 mask        [TM, N]
    att = att_ref[...]                          # per-channel att vector       [HC, 1] f32

    outs = []
    for h in range(heads):                      # static unroll; heads is 4 / 1
        sl = slice(h * c, (h + 1) * c)
        # GATv2: nonlinearity before the attention dot.  bf16 slab, j lane-dense;
        # per-head construction keeps the transient slab at [TM, C, N] instead of HC*N.
        e = xr_b[:, sl][:, :, None] + xl_t[sl, :][None, :, :]                 # [TM, C, N]
        e = jnp.where(e > 0, e, NEG_SLOPE * e)
        # att contraction over channels: VPU multiply + sublane reduce with f32
        # accumulation (an MXU matmul here would be K=C=8 with a heads-wide output).
        s = jnp.sum(e * att[sl, :][None, :, :], axis=1)                       # [TM, N] f32

        # Masked softmax over sources j (lane axis).  Additive mask only: masked entries
        # underflow to exactly 0 after the row-max subtraction (self loop guarantees a
        # finite max and a strictly positive denominator).
        s = s + maskb
        s = s - jnp.max(s, axis=-1, keepdims=True)
        p = jnp.exp(s)                                                        # [TM, N]
        den = jnp.sum(p, axis=-1, keepdims=True)                              # [TM, 1]

        # Aggregation: per-head MXU matmul with a lane-dense K=N contraction
        # (replaces the [N, N, HC] pexp slab + K=heads expander matmul).
        num = jnp.dot(p.astype(MXU_DTYPE), xl_b[:, sl],
                      preferred_element_type=jnp.float32)                     # [TM, C]
        outs.append(num * pl.reciprocal(den, approx=True))                    # EUP divide

    out = outs[0] if heads == 1 else jnp.concatenate(outs, axis=-1)           # [TM, HC]
    out = out + bias_ref[...]
    if apply_relu:
        out = jnp.maximum(out, 0.0)
    out_ref[...] = out.astype(out_ref.dtype)    # single lane-dense store per row tile


def _gatv2_conv(x, maskb, params, *, heads, out_c, apply_relu, tile_m=None):
    """One GATv2Conv layer: grid over target-row tiles, sources kept whole in VMEM."""
    wl, bl, wr, br, att, bias = params
    n, f = x.shape
    hc = heads * out_c

    if tile_m is None or tile_m >= n:
        tile_m = n
    assert tile_m == n or (tile_m % 8 == 0 and n % tile_m == 0), \
        "tile_m must equal N or be a multiple of 8 dividing N"
    grid = (n // tile_m,)

    wl = wl.astype(MXU_DTYPE)
    wr = wr.astype(MXU_DTYPE)
    bl = bl.astype(jnp.float32)
    br = br.astype(jnp.float32)
    att_col = att.reshape(hc, 1).astype(jnp.float32)       # att_col[h*C + c] = att[h, c]
    bias = bias.astype(jnp.float32)

    kernel = functools.partial(_gatv2_conv_kernel, heads=heads, out_c=out_c,
                               apply_relu=apply_relu)

    in_specs = [
        pl.BlockSpec((n, f), lambda i: (0, 0)),            # x, all sources (resident)
        pl.BlockSpec((tile_m, f), lambda i: (i, 0)),       # x, this tile's target rows
        pl.BlockSpec((tile_m, n), lambda i: (i, 0)),       # additive mask rows (bf16)
        pl.BlockSpec((f, hc), lambda i: (0, 0)),           # Wl
        pl.BlockSpec((1, hc), lambda i: (0, 0)),           # bl
        pl.BlockSpec((f, hc), lambda i: (0, 0)),           # Wr
        pl.BlockSpec((1, hc), lambda i: (0, 0)),           # br
        pl.BlockSpec((hc, 1), lambda i: (0, 0)),           # att column
        pl.BlockSpec((1, hc), lambda i: (0, 0)),           # output bias
    ]
    out_specs = pl.BlockSpec((tile_m, hc), lambda i: (i, 0))

    # Rough advisory cost for XLA's scheduler around the custom call.
    flops = int(2 * n * f * hc * (grid[0] + 1) + 10 * n * n * hc)
    cost = pl.CostEstimate(flops=flops,
                           transcendentals=int(n * n * heads),
                           bytes_accessed=int(4 * n * f + 2 * n * n + 8 * f * hc
                                              + 16 * hc + 4 * n * hc))

    # Raise v5e's 16 MiB scoped-VMEM default; 32 MiB fits every generation at these sizes.
    # TODO(synk): for non-toy N, sweep TILE_M per generation against the per-tile budget
    # (double-buffered [TM, N] mask + per-head [TM, C, N] bf16 slab + f32 scores);
    # v7x has only 64 MiB physical VMEM, v6e has 128 MiB.
    vmem_limit = 32 * 1024 * 1024

    return pl.pallas_call(
        kernel,
        out_shape=jax.ShapeDtypeStruct((n, hc), jnp.float32),
        grid=grid,
        in_specs=in_specs,
        out_specs=out_specs,
        compiler_params=pltpu.CompilerParams(
            dimension_semantics=("parallel",),
            vmem_limit_bytes=vmem_limit),
        cost_estimate=cost,
    )(x, x, maskb, wl, bl, wr, br, att_col, bias)


def gatv2_block(x, adj, p1, p2, *, heads, hid_c, out_ch, tile_m=None):
    """Two-layer GATv2 block: conv1 -> ReLU -> conv2 (ReLU fused into the conv1 kernel)."""
    # Additive softmax mask in bf16 (halves the O(N^2) HBM/VMEM traffic; -1e30 is
    # representable).  PRECONDITION: every row has at least one 1 (self loops).
    maskb = ((adj - 1.0) * MASK_BIAS).astype(jnp.bfloat16)                     # [N, N]
    h = _gatv2_conv(x, maskb, p1, heads=heads, out_c=hid_c,
                    apply_relu=True, tile_m=tile_m)
    return _gatv2_conv(h, maskb, p2, heads=1, out_c=out_ch,
                       apply_relu=False, tile_m=tile_m)


# ----------------------------- pure-JAX reference ---------------------------

def _ref_layer(x, params, src, dst, *, heads, out_c, apply_relu):
    wl, bl, wr, br, att, bias = params
    n = x.shape[0]
    xl = (x @ wl + bl).reshape(n, heads, out_c)
    xr = (x @ wr + br).reshape(n, heads, out_c)
    e = xr[dst] + xl[src]                                  # [E, H, C]
    e = jnp.where(e > 0, e, NEG_SLOPE * e)
    score = jnp.sum(e * att[None], axis=-1)                # [E, H]
    smax = jax.ops.segment_max(score, dst, num_segments=n)
    p = jnp.exp(score - smax[dst])
    denom = jax.ops.segment_sum(p, dst, num_segments=n)
    alpha = p / denom[dst]
    out = jax.ops.segment_sum(xl[src] * alpha[..., None], dst, num_segments=n)
    out = out.reshape(n, heads * out_c) + bias
    return jnp.maximum(out, 0.0) if apply_relu else out


# ----------------------------------- main ------------------------------------

def _init_linear(key, fin, fout):
    scale = 1.0 / jnp.sqrt(jnp.float32(fin))
    kw, kb = jax.random.split(key)
    w = jax.random.uniform(kw, (fin, fout), jnp.float32, -scale, scale)
    b = jax.random.uniform(kb, (1, fout), jnp.float32, -scale, scale)
    return w, b


def _init_gatv2_params(key, fin, heads, out_c):
    k1, k2, k3, k4 = jax.random.split(key, 4)
    wl, bl = _init_linear(k1, fin, heads * out_c)
    wr, br = _init_linear(k2, fin, heads * out_c)
    att = 0.1 * jax.random.normal(k3, (heads, out_c), jnp.float32)
    bias = 0.1 * jax.random.normal(k4, (1, heads * out_c), jnp.float32)
    return (wl, bl, wr, br, att, bias)


if __name__ == "__main__":
    N, IN_CH, HID, OUT_CH, HEADS = 16, 16, 32, 8, 4
    HID_C = HID // HEADS
    TILE_M = 8                       # 2 row tiles -> exercises the parallel grid

    key = jax.random.PRNGKey(0)
    kx, kp1, kp2 = jax.random.split(key, 3)

    x = jax.random.normal(kx, (N, IN_CH), jnp.float32)

    # Deterministic graph: bidirectional ring (no duplicate edges, no self loops).
    ar = jnp.arange(N)
    src = jnp.concatenate([ar, (ar + 1) % N])
    dst = jnp.concatenate([(ar + 1) % N, ar])

    # Dense adjacency mask with self loops (PyG: remove_self_loops + add_self_loops).
    adj = jnp.zeros((N, N), jnp.float32).at[dst, src].set(1.0)
    adj = jnp.maximum(adj, jnp.eye(N, dtype=jnp.float32))

    p1 = _init_gatv2_params(kp1, IN_CH, HEADS, HID_C)      # conv1: 16 -> 4 heads x 8
    p2 = _init_gatv2_params(kp2, HID, 1, OUT_CH)           # conv2: 32 -> 1 head  x 8

    out = gatv2_block(x, adj, p1, p2, heads=HEADS, hid_c=HID_C, out_ch=OUT_CH,
                      tile_m=TILE_M)
    out = jax.block_until_ready(out)
    assert out.shape == (N, OUT_CH)

    # Cross-check against an edge-list (segment softmax) f32 reference, incl. self loops.
    # Tolerance covers the bf16 e slab / MXU operands + approx reciprocal in the kernel.
    src_f = jnp.concatenate([src, ar])
    dst_f = jnp.concatenate([dst, ar])
    h_ref = _ref_layer(x, p1, src_f, dst_f, heads=HEADS, out_c=HID_C, apply_relu=True)
    ref = _ref_layer(h_ref, p2, src_f, dst_f, heads=1, out_c=OUT_CH, apply_relu=False)
    max_err = float(jnp.max(jnp.abs(out - ref)))
    assert jnp.allclose(out, ref, rtol=5e-2, atol=5e-2), \
        f"mismatch vs reference (max|err|={max_err})"

    print("KERNEL_OK")
</pallas_src>

<mosaic_0001>
module attributes {stable_mosaic.version = 11 : i64} {
  func.func @_gatv2_conv_kernel(%arg0: i32, %arg1: memref<16x16xf32, #tpu.memory_space<vmem>>, %arg2: memref<8x16xf32, #tpu.memory_space<vmem>>, %arg3: memref<8x16xbf16, #tpu.memory_space<vmem>>, %arg4: memref<16x32xbf16, #tpu.memory_space<vmem>>, %arg5: memref<1x32xf32, #tpu.memory_space<vmem>>, %arg6: memref<16x32xbf16, #tpu.memory_space<vmem>>, %arg7: memref<1x32xf32, #tpu.memory_space<vmem>>, %arg8: memref<32x1xf32, #tpu.memory_space<vmem>>, %arg9: memref<1x32xf32, #tpu.memory_space<vmem>>, %arg10: memref<8x32xf32, #tpu.memory_space<vmem>>) attributes {dimension_semantics = [#tpu.dimension_semantics<parallel>], iteration_bounds = array<i64: 2>, scalar_prefetch = 0 : i64, scratch_operands = 0 : i64, tpu.core_type = #tpu.core_type<tc>, window_params = [{pipeline_mode = #tpu.pipeline_mode<synchronous>, transform_indices = @transform_0, window_bounds = array<i64: 16, 16>}, {transform_indices = @transform_1, window_bounds = array<i64: 8, 16>}, {transform_indices = @transform_2, window_bounds = array<i64: 8, 16>}, {pipeline_mode = #tpu.pipeline_mode<synchronous>, transform_indices = @transform_3, window_bounds = array<i64: 16, 32>}, {pipeline_mode = #tpu.pipeline_mode<synchronous>, transform_indices = @transform_4, window_bounds = array<i64: 1, 32>}, {pipeline_mode = #tpu.pipeline_mode<synchronous>, transform_indices = @transform_5, window_bounds = array<i64: 16, 32>}, {pipeline_mode = #tpu.pipeline_mode<synchronous>, transform_indices = @transform_6, window_bounds = array<i64: 1, 32>}, {pipeline_mode = #tpu.pipeline_mode<synchronous>, transform_indices = @transform_7, window_bounds = array<i64: 32, 1>}, {pipeline_mode = #tpu.pipeline_mode<synchronous>, transform_indices = @transform_8, window_bounds = array<i64: 1, 32>}, {transform_indices = @transform_9, window_bounds = array<i64: 8, 32>}]} {
    %c0 = arith.constant 0 : index
    %c0_0 = arith.constant 0 : index
    %0 = vector.load %arg1[%c0, %c0_0] : memref<16x16xf32, #tpu.memory_space<vmem>>, vector<16x16xf32>
    %1 = arith.truncf %0 : vector<16x16xf32> to vector<16x16xbf16>
    %c0_1 = arith.constant 0 : index
    %c0_2 = arith.constant 0 : index
    %2 = vector.load %arg4[%c0_1, %c0_2] : memref<16x32xbf16, #tpu.memory_space<vmem>>, vector<16x32xbf16>
    %cst = arith.constant dense<0.000000e+00> : vector<16x32xf32>
    %3 = tpu.matmul %1, %2, %cst {dimension_numbers = #tpu.dot_dimension_numbers<[1], [0], [0], [1], [0, 0, 1, 1], [], []>} : vector<16x16xbf16>, vector<16x32xbf16>, vector<16x32xf32> -> vector<16x32xf32>
    %c0_3 = arith.constant 0 : index
    %c0_4 = arith.constant 0 : index
    %4 = vector.load %arg5[%c0_3, %c0_4] : memref<1x32xf32, #tpu.memory_space<vmem>>, vector<1x32xf32>
    %5 = vector.broadcast %4 : vector<1x32xf32> to vector<16x32xf32>
    %6 = arith.addf %3, %5 : vector<16x32xf32>
    %c0_5 = arith.constant 0 : index
    %c0_6 = arith.constant 0 : index
    %7 = vector.load %arg2[%c0_5, %c0_6] : memref<8x16xf32, #tpu.memory_space<vmem>>, vector<8x16xf32>
    %8 = arith.truncf %7 : vector<8x16xf32> to vector<8x16xbf16>
    %c0_7 = arith.constant 0 : index
    %c0_8 = arith.constant 0 : index
    %9 = vector.load %arg6[%c0_7, %c0_8] : memref<16x32xbf16, #tpu.memory_space<vmem>>, vector<16x32xbf16>
    %cst_9 = arith.constant dense<0.000000e+00> : vector<8x32xf32>
    %10 = tpu.matmul %8, %9, %cst_9 {dimension_numbers = #tpu.dot_dimension_numbers<[1], [0], [0], [1], [0, 0, 1, 1], [], []>} : vector<8x16xbf16>, vector<16x32xbf16>, vector<8x32xf32> -> vector<8x32xf32>
    %c0_10 = arith.constant 0 : index
    %c0_11 = arith.constant 0 : index
    %11 = vector.load %arg7[%c0_10, %c0_11] : memref<1x32xf32, #tpu.memory_space<vmem>>, vector<1x32xf32>
    %12 = vector.broadcast %11 : vector<1x32xf32> to vector<8x32xf32>
    %13 = arith.addf %10, %12 : vector<8x32xf32>
    %14 = arith.truncf %6 : vector<16x32xf32> to vector<16x32xbf16>
    %15 = tpu.transpose %6, [1, 0] : vector<16x32xf32> -> vector<32x16xf32>
    %16 = arith.truncf %15 : vector<32x16xf32> to vector<32x16xbf16>
    %17 = arith.truncf %13 : vector<8x32xf32> to vector<8x32xbf16>
    %c0_12 = arith.constant 0 : index
    %c0_13 = arith.constant 0 : index
    %18 = vector.load %arg3[%c0_12, %c0_13] : memref<8x16xbf16, #tpu.memory_space<vmem>>, vector<8x16xbf16>
    %19 = arith.extf %18 : vector<8x16xbf16> to vector<8x16xf32>
    %c0_14 = arith.constant 0 : index
    %c0_15 = arith.constant 0 : index
    %20 = vector.load %arg8[%c0_14, %c0_15] : memref<32x1xf32, #tpu.memory_space<vmem>>, vector<32x1xf32>
    %21 = vector.extract_strided_slice %17 {offsets = [0, 0], sizes = [8, 8], strides = [1, 1]} : vector<8x32xbf16> to vector<8x8xbf16>
    %22 = vector.shape_cast %21 : vector<8x8xbf16> to vector<8x8x1xbf16>
    %23 = vector.extract_strided_slice %16 {offsets = [0, 0], sizes = [8, 16], strides = [1, 1]} : vector<32x16xbf16> to vector<8x16xbf16>
    %24 = vector.shape_cast %23 : vector<8x16xbf16> to vector<1x8x16xbf16>
    %25 = vector.broadcast %22 : vector<8x8x1xbf16> to vector<8x8x16xbf16>
    %26 = vector.broadcast %24 : vector<1x8x16xbf16> to vector<8x8x16xbf16>
    %27 = arith.addf %25, %26 : vector<8x8x16xbf16>
    %cst_16 = arith.constant 0.000000e+00 : bf16
    %28 = vector.broadcast %cst_16 : bf16 to vector<8x8x16xbf16>
    %29 = arith.cmpf ogt, %27, %28 : vector<8x8x16xbf16>
    %cst_17 = arith.constant 2.001950e-01 : bf16
    %30 = vector.broadcast %cst_17 : bf16 to vector<8x8x16xbf16>
    %31 = arith.mulf %30, %27 : vector<8x8x16xbf16>
    %32 = arith.select %29, %27, %31 : vector<8x8x16xi1>, vector<8x8x16xbf16>
    %33 = vector.extract_strided_slice %20 {offsets = [0, 0], sizes = [8, 1], strides = [1, 1]} : vector<32x1xf32> to vector<8x1xf32>
    %34 = vector.shape_cast %33 : vector<8x1xf32> to vector<1x8x1xf32>
    %35 = arith.extf %32 : vector<8x8x16xbf16> to vector<8x8x16xf32>
    %36 = vector.broadcast %34 : vector<1x8x1xf32> to vector<8x8x16xf32>
    %37 = arith.mulf %35, %36 : vector<8x8x16xf32>
    %cst_18 = arith.constant dense<0.000000e+00> : vector<8x16xf32>
    %38 = vector.multi_reduction <add>, %37, %cst_18 [1] : vector<8x8x16xf32> to vector<8x16xf32>
    %39 = arith.addf %38, %19 : vector<8x16xf32>
    %cst_19 = arith.constant dense<0xFF800000> : vector<8xf32>
    %40 = vector.multi_reduction <maximumf>, %39, %cst_19 [1] : vector<8x16xf32> to vector<8xf32>
    %41 = vector.shape_cast %40 : vector<8xf32> to vector<8x1xf32>
    %42 = vector.broadcast %41 : vector<8x1xf32> to vector<8x16xf32>
    %43 = arith.subf %39, %42 : vector<8x16xf32>
    %44 = math.exp %43 : vector<8x16xf32>
    %cst_20 = arith.constant dense<0.000000e+00> : vector<8xf32>
    %45 = vector.multi_reduction <add>, %44, %cst_20 [1] : vector<8x16xf32> to vector<8xf32>
    %46 = vector.shape_cast %45 : vector<8xf32> to vector<8x1xf32>
    %47 = arith.truncf %44 : vector<8x16xf32> to vector<8x16xbf16>
    %48 = vector.extract_strided_slice %14 {offsets = [0, 0], sizes = [16, 8], strides = [1, 1]} : vector<16x32xbf16> to vector<16x8xbf16>
    %cst_21 = arith.constant dense<0.000000e+00> : vector<8x8xf32>
    %49 = tpu.matmul %47, %48, %cst_21 {dimension_numbers = #tpu.dot_dimension_numbers<[1], [0], [0], [1], [0, 0, 1, 1], [], []>} : vector<8x16xbf16>, vector<16x8xbf16>, vector<8x8xf32> -> vector<8x8xf32>
    %50 = tpu.reciprocal %46 {approx = true} : vector<8x1xf32> -> vector<8x1xf32>
    %51 = vector.broadcast %50 : vector<8x1xf32> to vector<8x8xf32>
    %52 = arith.mulf %49, %51 : vector<8x8xf32>
    %53 = vector.extract_strided_slice %17 {offsets = [0, 8], sizes = [8, 8], strides = [1, 1]} : vector<8x32xbf16> to vector<8x8xbf16>
    %54 = vector.shape_cast %53 : vector<8x8xbf16> to vector<8x8x1xbf16>
    %55 = vector.extract_strided_slice %16 {offsets = [8, 0], sizes = [8, 16], strides = [1, 1]} : vector<32x16xbf16> to vector<8x16xbf16>
    %56 = vector.shape_cast %55 : vector<8x16xbf16> to vector<1x8x16xbf16>
    %57 = vector.broadcast %54 : vector<8x8x1xbf16> to vector<8x8x16xbf16>
    %58 = vector.broadcast %56 : vector<1x8x16xbf16> to vector<8x8x16xbf16>
    %59 = arith.addf %57, %58 : vector<8x8x16xbf16>
    %cst_22 = arith.constant 0.000000e+00 : bf16
    %60 = vector.broadcast %cst_22 : bf16 to vector<8x8x16xbf16>
    %61 = arith.cmpf ogt, %59, %60 : vector<8x8x16xbf16>
    %cst_23 = arith.constant 2.001950e-01 : bf16
    %62 = vector.broadcast %cst_23 : bf16 to vector<8x8x16xbf16>
    %63 = arith.mulf %62, %59 : vector<8x8x16xbf16>
    %64 = arith.select %61, %59, %63 : vector<8x8x16xi1>, vector<8x8x16xbf16>
    %65 = vector.extract_strided_slice %20 {offsets = [8, 0], sizes = [8, 1], strides = [1, 1]} : vector<32x1xf32> to vector<8x1xf32>
    %66 = vector.shape_cast %65 : vector<8x1xf32> to vector<1x8x1xf32>
    %67 = arith.extf %64 : vector<8x8x16xbf16> to vector<8x8x16xf32>
    %68 = vector.broadcast %66 : vector<1x8x1xf32> to vector<8x8x16xf32>
    %69 = arith.mulf %67, %68 : vector<8x8x16xf32>
    %cst_24 = arith.constant dense<0.000000e+00> : vector<8x16xf32>
    %70 = vector.multi_reduction <add>, %69, %cst_24 [1] : vector<8x8x16xf32> to vector<8x16xf32>
    %71 = arith.addf %70, %19 : vector<8x16xf32>
    %cst_25 = arith.constant dense<0xFF800000> : vector<8xf32>
    %72 = vector.multi_reduction <maximumf>, %71, %cst_25 [1] : vector<8x16xf32> to vector<8xf32>
    %73 = vector.shape_cast %72 : vector<8xf32> to vector<8x1xf32>
    %74 = vector.broadcast %73 : vector<8x1xf32> to vector<8x16xf32>
    %75 = arith.subf %71, %74 : vector<8x16xf32>
    %76 = math.exp %75 : vector<8x16xf32>
    %cst_26 = arith.constant dense<0.000000e+00> : vector<8xf32>
    %77 = vector.multi_reduction <add>, %76, %cst_26 [1] : vector<8x16xf32> to vector<8xf32>
    %78 = vector.shape_cast %77 : vector<8xf32> to vector<8x1xf32>
    %79 = arith.truncf %76 : vector<8x16xf32> to vector<8x16xbf16>
    %80 = vector.extract_strided_slice %14 {offsets = [0, 8], sizes = [16, 8], strides = [1, 1]} : vector<16x32xbf16> to vector<16x8xbf16>
    %cst_27 = arith.constant dense<0.000000e+00> : vector<8x8xf32>
    %81 = tpu.matmul %79, %80, %cst_27 {dimension_numbers = #tpu.dot_dimension_numbers<[1], [0], [0], [1], [0, 0, 1, 1], [], []>} : vector<8x16xbf16>, vector<16x8xbf16>, vector<8x8xf32> -> vector<8x8xf32>
    %82 = tpu.reciprocal %78 {approx = true} : vector<8x1xf32> -> vector<8x1xf32>
    %83 = vector.broadcast %82 : vector<8x1xf32> to vector<8x8xf32>
    %84 = arith.mulf %81, %83 : vector<8x8xf32>
    %85 = vector.extract_strided_slice %17 {offsets = [0, 16], sizes = [8, 8], strides = [1, 1]} : vector<8x32xbf16> to vector<8x8xbf16>
    %86 = vector.shape_cast %85 : vector<8x8xbf16> to vector<8x8x1xbf16>
    %87 = vector.extract_strided_slice %16 {offsets = [16, 0], sizes = [8, 16], strides = [1, 1]} : vector<32x16xbf16> to vector<8x16xbf16>
    %88 = vector.shape_cast %87 : vector<8x16xbf16> to vector<1x8x16xbf16>
    %89 = vector.broadcast %86 : vector<8x8x1xbf16> to vector<8x8x16xbf16>
    %90 = vector.broadcast %88 : vector<1x8x16xbf16> to vector<8x8x16xbf16>
    %91 = arith.addf %89, %90 : vector<8x8x16xbf16>
    %cst_28 = arith.constant 0.000000e+00 : bf16
    %92 = vector.broadcast %cst_28 : bf16 to vector<8x8x16xbf16>
    %93 = arith.cmpf ogt, %91, %92 : vector<8x8x16xbf16>
    %cst_29 = arith.constant 2.001950e-01 : bf16
    %94 = vector.broadcast %cst_29 : bf16 to vector<8x8x16xbf16>
    %95 = arith.mulf %94, %91 : vector<8x8x16xbf16>
    %96 = arith.select %93, %91, %95 : vector<8x8x16xi1>, vector<8x8x16xbf16>
    %97 = vector.extract_strided_slice %20 {offsets = [16, 0], sizes = [8, 1], strides = [1, 1]} : vector<32x1xf32> to vector<8x1xf32>
    %98 = vector.shape_cast %97 : vector<8x1xf32> to vector<1x8x1xf32>
    %99 = arith.extf %96 : vector<8x8x16xbf16> to vector<8x8x16xf32>
    %100 = vector.broadcast %98 : vector<1x8x1xf32> to vector<8x8x16xf32>
    %101 = arith.mulf %99, %100 : vector<8x8x16xf32>
    %cst_30 = arith.constant dense<0.000000e+00> : vector<8x16xf32>
    %102 = vector.multi_reduction <add>, %101, %cst_30 [1] : vector<8x8x16xf32> to vector<8x16xf32>
    %103 = arith.addf %102, %19 : vector<8x16xf32>
    %cst_31 = arith.constant dense<0xFF800000> : vector<8xf32>
    %104 = vector.multi_reduction <maximumf>, %103, %cst_31 [1] : vector<8x16xf32> to vector<8xf32>
    %105 = vector.shape_cast %104 : vector<8xf32> to vector<8x1xf32>
    %106 = vector.broadcast %105 : vector<8x1xf32> to vector<8x16xf32>
    %107 = arith.subf %103, %106 : vector<8x16xf32>
    %108 = math.exp %107 : vector<8x16xf32>
    %cst_32 = arith.constant dense<0.000000e+00> : vector<8xf32>
    %109 = vector.multi_reduction <add>, %108, %cst_32 [1] : vector<8x16xf32> to vector<8xf32>
    %110 = vector.shape_cast %109 : vector<8xf32> to vector<8x1xf32>
    %111 = arith.truncf %108 : vector<8x16xf32> to vector<8x16xbf16>
    %112 = vector.extract_strided_slice %14 {offsets = [0, 16], sizes = [16, 8], strides = [1, 1]} : vector<16x32xbf16> to vector<16x8xbf16>
    %cst_33 = arith.constant dense<0.000000e+00> : vector<8x8xf32>
    %113 = tpu.matmul %111, %112, %cst_33 {dimension_numbers = #tpu.dot_dimension_numbers<[1], [0], [0], [1], [0, 0, 1, 1], [], []>} : vector<8x16xbf16>, vector<16x8xbf16>, vector<8x8xf32> -> vector<8x8xf32>
    %114 = tpu.reciprocal %110 {approx = true} : vector<8x1xf32> -> vector<8x1xf32>
    %115 = vector.broadcast %114 : vector<8x1xf32> to vector<8x8xf32>
    %116 = arith.mulf %113, %115 : vector<8x8xf32>
    %117 = vector.extract_strided_slice %17 {offsets = [0, 24], sizes = [8, 8], strides = [1, 1]} : vector<8x32xbf16> to vector<8x8xbf16>
    %118 = vector.shape_cast %117 : vector<8x8xbf16> to vector<8x8x1xbf16>
    %119 = vector.extract_strided_slice %16 {offsets = [24, 0], sizes = [8, 16], strides = [1, 1]} : vector<32x16xbf16> to vector<8x16xbf16>
    %120 = vector.shape_cast %119 : vector<8x16xbf16> to vector<1x8x16xbf16>
    %121 = vector.broadcast %118 : vector<8x8x1xbf16> to vector<8x8x16xbf16>
    %122 = vector.broadcast %120 : vector<1x8x16xbf16> to vector<8x8x16xbf16>
    %123 = arith.addf %121, %122 : vector<8x8x16xbf16>
    %cst_34 = arith.constant 0.000000e+00 : bf16
    %124 = vector.broadcast %cst_34 : bf16 to vector<8x8x16xbf16>
    %125 = arith.cmpf ogt, %123, %124 : vector<8x8x16xbf16>
    %cst_35 = arith.constant 2.001950e-01 : bf16
    %126 = vector.broadcast %cst_35 : bf16 to vector<8x8x16xbf16>
    %127 = arith.mulf %126, %123 : vector<8x8x16xbf16>
    %128 = arith.select %125, %123, %127 : vector<8x8x16xi1>, vector<8x8x16xbf16>
    %129 = vector.extract_strided_slice %20 {offsets = [24, 0], sizes = [8, 1], strides = [1, 1]} : vector<32x1xf32> to vector<8x1xf32>
    %130 = vector.shape_cast %129 : vector<8x1xf32> to vector<1x8x1xf32>
    %131 = arith.extf %128 : vector<8x8x16xbf16> to vector<8x8x16xf32>
    %132 = vector.broadcast %130 : vector<1x8x1xf32> to vector<8x8x16xf32>
    %133 = arith.mulf %131, %132 : vector<8x8x16xf32>
    %cst_36 = arith.constant dense<0.000000e+00> : vector<8x16xf32>
    %134 = vector.multi_reduction <add>, %133, %cst_36 [1] : vector<8x8x16xf32> to vector<8x16xf32>
    %135 = arith.addf %134, %19 : vector<8x16xf32>
    %cst_37 = arith.constant dense<0xFF800000> : vector<8xf32>
    %136 = vector.multi_reduction <maximumf>, %135, %cst_37 [1] : vector<8x16xf32> to vector<8xf32>
    %137 = vector.shape_cast %136 : vector<8xf32> to vector<8x1xf32>
    %138 = vector.broadcast %137 : vector<8x1xf32> to vector<8x16xf32>
    %139 = arith.subf %135, %138 : vector<8x16xf32>
    %140 = math.exp %139 : vector<8x16xf32>
    %cst_38 = arith.constant dense<0.000000e+00> : vector<8xf32>
    %141 = vector.multi_reduction <add>, %140, %cst_38 [1] : vector<8x16xf32> to vector<8xf32>
    %142 = vector.shape_cast %141 : vector<8xf32> to vector<8x1xf32>
    %143 = arith.truncf %140 : vector<8x16xf32> to vector<8x16xbf16>
    %144 = vector.extract_strided_slice %14 {offsets = [0, 24], sizes = [16, 8], strides = [1, 1]} : vector<16x32xbf16> to vector<16x8xbf16>
    %cst_39 = arith.constant dense<0.000000e+00> : vector<8x8xf32>
    %145 = tpu.matmul %143, %144, %cst_39 {dimension_numbers = #tpu.dot_dimension_numbers<[1], [0], [0], [1], [0, 0, 1, 1], [], []>} : vector<8x16xbf16>, vector<16x8xbf16>, vector<8x8xf32> -> vector<8x8xf32>
    %146 = tpu.reciprocal %142 {approx = true} : vector<8x1xf32> -> vector<8x1xf32>
    %147 = vector.broadcast %146 : vector<8x1xf32> to vector<8x8xf32>
    %148 = arith.mulf %145, %147 : vector<8x8xf32>
    %149 = tpu.concatenate %52, %84, %116, %148 in 1 : vector<8x8xf32>, vector<8x8xf32>, vector<8x8xf32>, vector<8x8xf32> -> vector<8x32xf32>
    %c0_40 = arith.constant 0 : index
    %c0_41 = arith.constant 0 : index
    %150 = vector.load %arg9[%c0_40, %c0_41] : memref<1x32xf32, #tpu.memory_space<vmem>>, vector<1x32xf32>
    %151 = vector.broadcast %150 : vector<1x32xf32> to vector<8x32xf32>
    %152 = arith.addf %149, %151 : vector<8x32xf32>
    %cst_42 = arith.constant 0.000000e+00 : f32
    %153 = vector.broadcast %cst_42 : f32 to vector<8x32xf32>
    %154 = arith.maximumf %152, %153 : vector<8x32xf32>
    %c0_43 = arith.constant 0 : index
    %c0_44 = arith.constant 0 : index
    %155 = vector.load %arg10[%c0_43, %c0_44] : memref<8x32xf32, #tpu.memory_space<vmem>>, vector<8x32xf32>
    tpu.vector_store %arg10[%c0_43, %c0_44], %154 {strides = array<i32>} : memref<8x32xf32, #tpu.memory_space<vmem>>, vector<8x32xf32>,
    return
  }
  func.func @transform_0(%arg0: i32) -> (i32, i32) {
    %c0_i32 = arith.constant 0 : i32
    %c0_i32_0 = arith.constant 0 : i32
    %c0_i32_1 = arith.constant 0 : i32
    return %c0_i32, %c0_i32_0 : i32, i32
  }
  func.func @transform_1(%arg0: i32) -> (i32, i32) {
    %c0_i32 = arith.constant 0 : i32
    %c0_i32_0 = arith.constant 0 : i32
    return %arg0, %c0_i32 : i32, i32
  }
  func.func @transform_2(%arg0: i32) -> (i32, i32) {
    %c0_i32 = arith.constant 0 : i32
    %c0_i32_0 = arith.constant 0 : i32
    return %arg0, %c0_i32 : i32, i32
  }
  func.func @transform_3(%arg0: i32) -> (i32, i32) {
    %c0_i32 = arith.constant 0 : i32
    %c0_i32_0 = arith.constant 0 : i32
    %c0_i32_1 = arith.constant 0 : i32
    return %c0_i32, %c0_i32_0 : i32, i32
  }
  func.func @transform_4(%arg0: i32) -> (i32, i32) {
    %c0_i32 = arith.constant 0 : i32
    %c0_i32_0 = arith.constant 0 : i32
    %c0_i32_1 = arith.constant 0 : i32
    return %c0_i32, %c0_i32_0 : i32, i32
  }
  func.func @transform_5(%arg0: i32) -> (i32, i32) {
    %c0_i32 = arith.constant 0 : i32
    %c0_i32_0 = arith.constant 0 : i32
    %c0_i32_1 = arith.constant 0 : i32
    return %c0_i32, %c0_i32_0 : i32, i32
  }
  func.func @transform_6(%arg0: i32) -> (i32, i32) {
    %c0_i32 = arith.constant 0 : i32
    %c0_i32_0 = arith.constant 0 : i32
    %c0_i32_1 = arith.constant 0 : i32
    return %c0_i32, %c0_i32_0 : i32, i32
  }
  func.func @transform_7(%arg0: i32) -> (i32, i32) {
    %c0_i32 = arith.constant 0 : i32
    %c0_i32_0 = arith.constant 0 : i32
    %c0_i32_1 = arith.constant 0 : i32
    return %c0_i32, %c0_i32_0 : i32, i32
  }
  func.func @transform_8(%arg0: i32) -> (i32, i32) {
    %c0_i32 = arith.constant 0 : i32
    %c0_i32_0 = arith.constant 0 : i32
    %c0_i32_1 = arith.constant 0 : i32
    return %c0_i32, %c0_i32_0 : i32, i32
  }
  func.func @transform_9(%arg0: i32) -> (i32, i32) {
    %c0_i32 = arith.constant 0 : i32
    %c0_i32_0 = arith.constant 0 : i32
    return %arg0, %c0_i32 : i32, i32
  }
}

</mosaic_0001>

<llo_original>
// kernel: tpu_custom_call.1
$region0: #{tpu_custom_call.1}
  #allocation0 [shape = 'u32[]', space=smem, size = 0x4, offset = 0x4, fixed_abs, tag = 'smem constant byte address 0x4 - core index']
  #allocation1 [shape = 'u32[144,128]{1,0:T(1,128)}', space=vmem, size = 0x12000, scoped, tag = 'internal scratch']
  %s0 = inlined_call_operand.vmem [shape: f32[16,16], index: 0, kind: input, shape index: {}]
  %s1 = inlined_call_operand.vmem [shape: f32[16,16], index: 1, kind: input, shape index: {}]
  %s2 = inlined_call_operand.vmem [shape: bf16[16,16], index: 2, kind: input, shape index: {}]
  %s3 = inlined_call_operand.hbm [shape: bf16[16,32], index: 3, kind: input, shape index: {}]
  %s4 = inlined_call_operand.hbm [shape: f32[1,32], index: 4, kind: input, shape index: {}]
  %s5 = inlined_call_operand.vmem [shape: bf16[16,32], index: 5, kind: input, shape index: {}]
  %s6 = inlined_call_operand.vmem [shape: f32[1,32], index: 6, kind: input, shape index: {}]
  %s7 = inlined_call_operand.vmem [shape: f32[32,1], index: 7, kind: input, shape index: {}]
  %s8 = inlined_call_operand.vmem [shape: f32[1,32], index: 8, kind: input, shape index: {}]
  %s9 = inlined_call_operand.hbm [shape: f32[16,32], index: 9, kind: output, shape index: {}]
  %s10 = sld [smem:[#allocation0]]
  $region77: #{tpu_custom_call.1} parent=0
    _
  %s12 = ssub.s32 1, %s10
  %s13 = scalar_select 0, %s12, %s10
  $region1: #{tpu_custom_call.1} parent=0
    #allocation2 [shape = 'u8[4096]{0}', space=vmem, size = 0x1000, scoped, tag = 'input window, operand 3, single buffered']
    #allocation3 [shape = 's32[2]{0}', space=sflag, size = 0x8, scoped, tag = 'scoped memory for tpu_custom_call.1']
    #allocation4 [shape = 's32[2]{0}', space=sflag, size = 0x8, scoped, tag = 'scoped memory for tpu_custom_call.1']
    #allocation5 [shape = 'u8[512]{0}', space=vmem, size = 0x400, scoped, tag = 'input window, operand 4, single buffered']
    #allocation6 [shape = 's32[1]{0}', space=sflag, size = 0x4, scoped, tag = 'scoped memory for tpu_custom_call.1']
    #allocation7 [shape = 'u8[8192]{0}', space=vmem, size = 0x2000, scoped, tag = 'output window, operand 0']
    %14 = vsyncpa [#allocation3], 0
    %15 = vsyncpa [#allocation6], 0
    %16 = vsyncpa [#allocation4], 0
    %s17 = scalar_lea.sflag [#allocation4], 1
    %18 = vsyncpa %s17, 0
    loop: start=0, step=1, limit=4
    $region2: #{tpu_custom_call.1} parent=1 // loop_pre_header
      _
    $region3: #{tpu_custom_call.1} parent=1 // loop_header
      %s20 = sphi 0, %s24
      %p21 = scmp.ge.s32.totalorder %s20, 4
      %s28 = sphi 0, %s28
      %s30 = sphi 0, %s28
      %s31 = sphi 0, %s30
      %s45 = sphi 0, %s31
      %s51 = sphi 0, %s53
      %s54 = sphi 0, %s51
      %s55 = sphi 0, %s54
      %s71 = sphi 0, %s55
      %s77 = sphi 0, %s79
      %s80 = sphi 0, %s77
      %s81 = sphi 0, %s80
      %s97 = sphi 0, %s81
      %s101 = sphi 0, %s101
      %s103 = sphi 0, %s101
      %s104 = sphi 0, %s103
      %s118 = sphi 0, %s104
      %s122 = sphi 0, %s122
      %s124 = sphi 0, %s122
      %s125 = sphi 0, %s124
      %s139 = sphi 0, %s125
      %s143 = sphi 0, %s143
      %s145 = sphi 0, %s143
      %s146 = sphi 0, %s145
      %s160 = sphi 0, %s146
      %s164 = sphi 0, %s164
      %s166 = sphi 0, %s164
      %s167 = sphi 0, %s166
      %s181 = sphi 0, %s167
      %s185 = sphi 0, %s185
      %s187 = sphi 0, %s185
      %s188 = sphi 0, %s187
      %s202 = sphi 0, %s188
      %s206 = sphi 0, %s206
      %s208 = sphi 0, %s206
      %s209 = sphi 0, %s208
      %s223 = sphi 0, %s209
      %s229 = sphi 0, %s231
      %s232 = sphi 0, %s229
      %s233 = sphi 0, %s232
      %s249 = sphi 0, %s233
    $region4: #{tpu_custom_call.1} parent=1 // loop_header_branch
      %23 = sbr.rel (%p21) target = $region8
    $region5: #{tpu_custom_call.1} parent=1 // loop_body
      %s25 = ssub.s32 %s20, 1
      %s26 = ssub.s32 %s20, 2
      %s27 = sadd.s32 %s20, 1
      %s29 = sadd.s32 %s28, 1
      %p32 = scmp.eq.s32.totalorder %s20, 1
      %p33 = scmp.ne.s32.totalorder %s28, %s30
      %p34 = scmp.eq.s32.totalorder %s20, 0
      %p35 = por %p33, %p34
      %p36 = scmp.ne.s32.totalorder %s28, %s30
      %p37 = scmp.eq.s32.totalorder %s25, 1
      %p38 = por %p36, %p37
      %p39 = scmp.ne.s32.totalorder %s30, %s31
      %p40 = scmp.eq.s32.totalorder %s25, 0
      %p41 = por %p39, %p40
      %p42 = scmp.ne.s32.totalorder %s30, %s31
      %p43 = scmp.eq.s32.totalorder %s26, 1
      %p44 = por %p42, %p43
      %p46 = scmp.ne.s32.totalorder %s31, %s45
      %p47 = scmp.eq.s32.totalorder %s26, 0
      %p48 = por %p46, %p47
      %s49 = ssub.s32 %s20, %s27
      %p50 = scmp.eq.s32.totalorder %s49, 0
      %s52 = sadd.s32 %s51, 1
      %s53 = scalar_select %p50, %s51, %s52
      %p56 = pneg %p50
      %p57 = scmp.eq.s32.totalorder %s20, 1
      %p58 = por %p56, %p57
      %p59 = scmp.ne.s32.totalorder %s51, %s54
      %p60 = scmp.eq.s32.totalorder %s20, 0
      %p61 = por %p59, %p60
      %p62 = scmp.ne.s32.totalorder %s51, %s54
      %p63 = scmp.eq.s32.totalorder %s25, 1
      %p64 = por %p62, %p63
      %p65 = scmp.ne.s32.totalorder %s54, %s55
      %p66 = scmp.eq.s32.totalorder %s25, 0
      %p67 = por %p65, %p66
      %p68 = scmp.ne.s32.totalorder %s54, %s55
      %p69 = scmp.eq.s32.totalorder %s26, 1
      %p70 = por %p68, %p69
      %p72 = scmp.ne.s32.totalorder %s55, %s71
      %p73 = scmp.eq.s32.totalorder %s26, 0
      %p74 = por %p72, %p73
      %s75 = ssub.s32 %s20, %s27
      %p76 = scmp.eq.s32.totalorder %s75, 0
      %s78 = sadd.s32 %s77, 1
      %s79 = scalar_select %p76, %s77, %s78
      %p82 = pneg %p76
      %p83 = scmp.eq.s32.totalorder %s20, 1
      %p84 = por %p82, %p83
      %p85 = scmp.ne.s32.totalorder %s77, %s80
      %p86 = scmp.eq.s32.totalorder %s20, 0
      %p87 = por %p85, %p86
      %p88 = scmp.ne.s32.totalorder %s77, %s80
      %p89 = scmp.eq.s32.totalorder %s25, 1
      %p90 = por %p88, %p89
      %p91 = scmp.ne.s32.totalorder %s80, %s81
      %p92 = scmp.eq.s32.totalorder %s25, 0
      %p93 = por %p91, %p92
      %p94 = scmp.ne.s32.totalorder %s80, %s81
      %p95 = scmp.eq.s32.totalorder %s26, 1
      %p96 = por %p94, %p95
      %p98 = scmp.ne.s32.totalorder %s81, %s97
      %p99 = scmp.eq.s32.totalorder %s26, 0
      %p100 = por %p98, %p99
      %s102 = sadd.s32 %s101, 1
      %p105 = scmp.eq.s32.totalorder %s20, 1
      %p106 = scmp.ne.s32.totalorder %s101, %s103
      %p107 = scmp.eq.s32.totalorder %s20, 0
      %p108 = por %p106, %p107
      %p109 = scmp.ne.s32.totalorder %s101, %s103
      %p110 = scmp.eq.s32.totalorder %s25, 1
      %p111 = por %p109, %p110
      %p112 = scmp.ne.s32.totalorder %s103, %s104
      %p113 = scmp.eq.s32.totalorder %s25, 0
      %p114 = por %p112, %p113
      %p115 = scmp.ne.s32.totalorder %s103, %s104
      %p116 = scmp.eq.s32.totalorder %s26, 1
      %p117 = por %p115, %p116
      %p119 = scmp.ne.s32.totalorder %s104, %s118
      %p120 = scmp.eq.s32.totalorder %s26, 0
      %p121 = por %p119, %p120
      %s123 = sadd.s32 %s122, 1
      %p126 = scmp.eq.s32.totalorder %s20, 1
      %p127 = scmp.ne.s32.totalorder %s122, %s124
      %p128 = scmp.eq.s32.totalorder %s20, 0
      %p129 = por %p127, %p128
      %p130 = scmp.ne.s32.totalorder %s122, %s124
      %p131 = scmp.eq.s32.totalorder %s25, 1
      %p132 = por %p130, %p131
      %p133 = scmp.ne.s32.totalorder %s124, %s125
      %p134 = scmp.eq.s32.totalorder %s25, 0
      %p135 = por %p133, %p134
      %p136 = scmp.ne.s32.totalorder %s124, %s125
      %p137 = scmp.eq.s32.totalorder %s26, 1
      %p138 = por %p136, %p137
      %p140 = scmp.ne.s32.totalorder %s125, %s139
      %p141 = scmp.eq.s32.totalorder %s26, 0
      %p142 = por %p140, %p141
      %s144 = sadd.s32 %s143, 1
      %p147 = scmp.eq.s32.totalorder %s20, 1
      %p148 = scmp.ne.s32.totalorder %s143, %s145
      %p149 = scmp.eq.s32.totalorder %s20, 0
      %p150 = por %p148, %p149
      %p151 = scmp.ne.s32.totalorder %s143, %s145
      %p152 = scmp.eq.s32.totalorder %s25, 1
      %p153 = por %p151, %p152
      %p154 = scmp.ne.s32.totalorder %s145, %s146
      %p155 = scmp.eq.s32.totalorder %s25, 0
      %p156 = por %p154, %p155
      %p157 = scmp.ne.s32.totalorder %s145, %s146
      %p158 = scmp.eq.s32.totalorder %s26, 1
      %p159 = por %p157, %p158
      %p161 = scmp.ne.s32.totalorder %s146, %s160
      %p162 = scmp.eq.s32.totalorder %s26, 0
      %p163 = por %p161, %p162
      %s165 = sadd.s32 %s164, 1
      %p168 = scmp.eq.s32.totalorder %s20, 1
      %p169 = scmp.ne.s32.totalorder %s164, %s166
      %p170 = scmp.eq.s32.totalorder %s20, 0
      %p171 = por %p169, %p170
      %p172 = scmp.ne.s32.totalorder %s164, %s166
      %p173 = scmp.eq.s32.totalorder %s25, 1
      %p174 = por %p172, %p173
      %p175 = scmp.ne.s32.totalorder %s166, %s167
      %p176 = scmp.eq.s32.totalorder %s25, 0
      %p177 = por %p175, %p176
      %p178 = scmp.ne.s32.totalorder %s166, %s167
      %p179 = scmp.eq.s32.totalorder %s26, 1
      %p180 = por %p178, %p179
      %p182 = scmp.ne.s32.totalorder %s167, %s181
      %p183 = scmp.eq.s32.totalorder %s26, 0
      %p184 = por %p182, %p183
      %s186 = sadd.s32 %s185, 1
      %p189 = scmp.eq.s32.totalorder %s20, 1
      %p190 = scmp.ne.s32.totalorder %s185, %s187
      %p191 = scmp.eq.s32.totalorder %s20, 0
      %p192 = por %p190, %p191
      %p193 = scmp.ne.s32.totalorder %s185, %s187
      %p194 = scmp.eq.s32.totalorder %s25, 1
      %p195 = por %p193, %p194
      %p196 = scmp.ne.s32.totalorder %s187, %s188
      %p197 = scmp.eq.s32.totalorder %s25, 0
      %p198 = por %p196, %p197
      %p199 = scmp.ne.s32.totalorder %s187, %s188
      %p200 = scmp.eq.s32.totalorder %s26, 1
      %p201 = por %p199, %p200
      %p203 = scmp.ne.s32.totalorder %s188, %s202
      %p204 = scmp.eq.s32.totalorder %s26, 0
      %p205 = por %p203, %p204
      %s207 = sadd.s32 %s206, 1
      %p210 = scmp.eq.s32.totalorder %s20, 1
      %p211 = scmp.ne.s32.totalorder %s206, %s208
      %p212 = scmp.eq.s32.totalorder %s20, 0
      %p213 = por %p211, %p212
      %p214 = scmp.ne.s32.totalorder %s206, %s208
      %p215 = scmp.eq.s32.totalorder %s25, 1
      %p216 = por %p214, %p215
      %p217 = scmp.ne.s32.totalorder %s208, %s209
      %p218 = scmp.eq.s32.totalorder %s25, 0
      %p219 = por %p217, %p218
      %p220 = scmp.ne.s32.totalorder %s208, %s209
      %p221 = scmp.eq.s32.totalorder %s26, 1
      %p222 = por %p220, %p221
      %p224 = scmp.ne.s32.totalorder %s209, %s223
      %p225 = scmp.eq.s32.totalorder %s26, 0
      %p226 = por %p224, %p225
      %s227 = ssub.s32 %s20, %s27
      %p228 = scmp.eq.s32.totalorder %s227, 0
      %s230 = sadd.s32 %s229, 1
      %s231 = scalar_select %p228, %s229, %s230
      %p234 = pneg %p228
      %p235 = scmp.eq.s32.totalorder %s20, 1
      %p236 = por %p234, %p235
      %p237 = scmp.ne.s32.totalorder %s229, %s232
      %p238 = scmp.eq.s32.totalorder %s20, 0
      %p239 = por %p237, %p238
      %p240 = scmp.ne.s32.totalorder %s229, %s232
      %p241 = scmp.eq.s32.totalorder %s25, 1
      %p242 = por %p240, %p241
      %p243 = scmp.ne.s32.totalorder %s232, %s233
      %p244 = scmp.eq.s32.totalorder %s25, 0
      %p245 = por %p243, %p244
      %p246 = scmp.ne.s32.totalorder %s232, %s233
      %p247 = scmp.eq.s32.totalorder %s26, 1
      %p248 = por %p246, %p247
      %p250 = scmp.ne.s32.totalorder %s233, %s249
      %p251 = scmp.eq.s32.totalorder %s26, 0
      %p252 = por %p250, %p251
      %p253 = scmp.le.s32.totalorder 1, %s20
      %p254 = scmp.lt.s32.totalorder %s20, 3
      %p255 = pnand %p253, %p254
      %p256 = pneg %p255
      // Predicated region
      $region9: #{tpu_custom_call.1} parent=5 // pred_check
        _
      $region10: #{tpu_custom_call.1} parent=5 // pred_check_branch
        %258 = sbr.rel (%p255) target = $region12
      $region11: #{tpu_custom_call.1} parent=5 // pred_region
        %s259 = ssub.s32 %s20, 1
        // Predicated region
        $region13: #{tpu_custom_call.1} parent=11 // pred_check
          %p260 = pneg %p41
        $region14: #{tpu_custom_call.1} parent=11 // pred_check_branch
          %262 = sbr.rel (%p260) target = $region16
        $region15: #{tpu_custom_call.1} parent=11 // pred_region
          _
        $region16: #{tpu_custom_call.1} parent=11 // pred_fallthru
          _
        // Predicated region
        $region17: #{tpu_custom_call.1} parent=11 // pred_check
          %p263 = pneg %p114
        $region18: #{tpu_custom_call.1} parent=11 // pred_check_branch
          %265 = sbr.rel (%p263) target = $region20
        $region19: #{tpu_custom_call.1} parent=11 // pred_region
          %s267 = ssub.s32 128, 128
          %268 = vsyncadd [#allocation3], %s267
          %s269 = sshll.u32 [#allocation2], 4
          %s270 = int_to_ptr.vmem [resolvable:$true] %s269
          %275 = dma.hbm_to_vmem [thread:$0]  %s3, 128, %s270, [#allocation3], 64, 64, 4
        $region20: #{tpu_custom_call.1} parent=11 // pred_fallthru
          _
        // Predicated region
        $region21: #{tpu_custom_call.1} parent=11 // pred_check
          %p276 = pneg %p135
        $region22: #{tpu_custom_call.1} parent=11 // pred_check_branch
          %278 = sbr.rel (%p276) target = $region24
        $region23: #{tpu_custom_call.1} parent=11 // pred_region
          %s280 = ssub.s32 16, 16
          %281 = vsyncadd [#allocation6], %s280
          %s283 = sshll.u32 [#allocation5], 4
          %s284 = int_to_ptr.vmem [resolvable:$true] %s283
          %286 = dma.hbm_to_vmem [thread:$0]  %s4, 16, %s284, [#allocation6]
        $region24: #{tpu_custom_call.1} parent=11 // pred_fallthru
          _
        // Predicated region
        $region25: #{tpu_custom_call.1} parent=11 // pred_check
          %p287 = pneg %p156
        $region26: #{tpu_custom_call.1} parent=11 // pred_check_branch
          %289 = sbr.rel (%p287) target = $region28
        $region27: #{tpu_custom_call.1} parent=11 // pred_region
          _
        $region28: #{tpu_custom_call.1} parent=11 // pred_fallthru
          _
        // Predicated region
        $region29: #{tpu_custom_call.1} parent=11 // pred_check
          %p290 = pneg %p177
        $region30: #{tpu_custom_call.1} parent=11 // pred_check_branch
          %292 = sbr.rel (%p290) target = $region32
        $region31: #{tpu_custom_call.1} parent=11 // pred_region
          _
        $region32: #{tpu_custom_call.1} parent=11 // pred_fallthru
          _
        // Predicated region
        $region33: #{tpu_custom_call.1} parent=11 // pred_check
          %p293 = pneg %p198
        $region34: #{tpu_custom_call.1} parent=11 // pred_check_branch
          %295 = sbr.rel (%p293) target = $region36
        $region35: #{tpu_custom_call.1} parent=11 // pred_region
          _
        $region36: #{tpu_custom_call.1} parent=11 // pred_fallthru
          _
        // Predicated region
        $region37: #{tpu_custom_call.1} parent=11 // pred_check
          %p296 = pneg %p219
        $region38: #{tpu_custom_call.1} parent=11 // pred_check_branch
          %298 = sbr.rel (%p296) target = $region40
        $region39: #{tpu_custom_call.1} parent=11 // pred_region
          _
        $region40: #{tpu_custom_call.1} parent=11 // pred_fallthru
          _
      $region12: #{tpu_custom_call.1} parent=5 // pred_fallthru
        _
      %p299 = scmp.lt.s32.totalorder %s20, 2
      // Predicated region
      $region41: #{tpu_custom_call.1} parent=5 // pred_check
        %p300 = pneg %p299
      $region42: #{tpu_custom_call.1} parent=5 // pred_check_branch
        %302 = sbr.rel (%p300) target = $region44
      $region43: #{tpu_custom_call.1} parent=5 // pred_region
        // Predicated region
        $region45: #{tpu_custom_call.1} parent=43 // pred_check
          %p303 = pneg %p61
        $region46: #{tpu_custom_call.1} parent=43 // pred_check_branch
          %305 = sbr.rel (%p303) target = $region48
        $region47: #{tpu_custom_call.1} parent=43 // pred_region
          %p306 = scmp.lt.s32.totalorder %s20, 1
          %s307 = scalar_select %p306, %s20, 1
          %s308 = smul.addr %s307, 8
          %s309 = scalar_lea.vmem %s1, %s308
        $region48: #{tpu_custom_call.1} parent=43 // pred_fallthru
          _
        // Predicated region
        $region49: #{tpu_custom_call.1} parent=43 // pred_check
          %p310 = pneg %p87
        $region50: #{tpu_custom_call.1} parent=43 // pred_check_branch
          %312 = sbr.rel (%p310) target = $region52
        $region51: #{tpu_custom_call.1} parent=43 // pred_region
          %p313 = scmp.lt.s32.totalorder %s20, 1
          %s314 = scalar_select %p313, %s20, 1
          %s315 = smul.addr %s314, 4
          %s316 = scalar_lea.vmem %s2, %s315
        $region52: #{tpu_custom_call.1} parent=43 // pred_fallthru
          _
      $region44: #{tpu_custom_call.1} parent=5 // pred_fallthru
        _
      %p317 = scmp.le.s32.totalorder 1, %s20
      %p318 = scmp.lt.s32.totalorder %s20, 3
      %p319 = pnand %p317, %p318
      %p320 = pneg %p319
      // Predicated region
      $region53: #{tpu_custom_call.1} parent=5 // pred_check
        _
      $region54: #{tpu_custom_call.1} parent=5 // pred_check_branch
        %322 = sbr.rel (%p319) target = $region56
      $region55: #{tpu_custom_call.1} parent=5 // pred_region
        %s323 = ssub.s32 %s20, 1
        // Predicated region
        $region57: #{tpu_custom_call.1} parent=55 // pred_check
          %p324 = pneg %p114
        $region58: #{tpu_custom_call.1} parent=55 // pred_check_branch
          %326 = sbr.rel (%p324) target = $region60
        $region59: #{tpu_custom_call.1} parent=55 // pred_region
          %327 = dma.done [#allocation3], 128
        $region60: #{tpu_custom_call.1} parent=55 // pred_fallthru
          _
        // Predicated region
        $region61: #{tpu_custom_call.1} parent=55 // pred_check
          %p328 = pneg %p135
        $region62: #{tpu_custom_call.1} parent=55 // pred_check_branch
          %330 = sbr.rel (%p328) target = $region64
        $region63: #{tpu_custom_call.1} parent=55 // pred_region
          %331 = dma.done [#allocation6], 16
        $region64: #{tpu_custom_call.1} parent=55 // pred_fallthru
          _
        %p332 = pneg %p41
        %p333 = pneg %p38
        %p334 = scmp.lt.s32.totalorder %s25, 1
        %s335 = scalar_select %p334, %s25, 1
        %s336 = smul.addr %s335, 8
        %s337 = scalar_lea.vmem %s1, %s336
        %p338 = pneg %p67
        %p339 = pneg %p64
        %p340 = scmp.lt.s32.totalorder %s25, 1
        %s341 = scalar_select %p340, %s25, 1
        %s342 = smul.addr %s341, 4
        %s343 = scalar_lea.vmem %s2, %s342
        %p344 = pneg %p93
        %p345 = pneg %p90
        %p346 = pneg %p114
        %p347 = pneg %p111
        %p348 = pneg %p135
        %p349 = pneg %p132
        %p350 = pneg %p156
        %p351 = pneg %p153
        %p352 = pneg %p177
        %p353 = pneg %p174
        %p354 = pneg %p198
        %p355 = pneg %p195
        %p356 = pneg %p219
        %p357 = pneg %p216
        %p358 = pneg %p245
        %p359 = pneg %p242
        %s360 = sand.u32 %s232, 1
        %s361 = scalar_lea.sflag [#allocation4], %s360
        %s362 = sand.u32 %s232, 1
        %s363 = smul.addr %s362, 8
        %s364 = scalar_lea.vmem [#allocation7], %s363
        %p365 = scmp.lt.s32.totalorder %s25, 1
        %s366 = scalar_select %p365, %s25, 1
        %s367 = smul.addr %s366, 8
        %s368 = scalar_lea.vmem %s1, %s367
        %p369 = scmp.lt.s32.totalorder %s25, 1
        %s370 = scalar_select %p369, %s25, 1
        %s371 = smul.addr %s370, 4
        %s372 = scalar_lea.vmem %s2, %s371
        %v375 = vld [vmem:[%s0] sm:$0xff]
        %v376 = vld [vmem:[%s0 + $0x8] sm:$0xff]
        %v377 = vpack.c.bf16 %v376, %v375
        %v378 = vld [vmem:[#allocation2] sm:$0xf]
        %v379 = vld [vmem:[#allocation2 + $0x4] sm:$0xf]
        %v380 = vld [vmem:[#allocation5] sm:$0x1]
        %v382 = vlaneseq
        %v383 = vshrl.u32 %v382, 7
        %v384 = vsub.s32 0, %v383
        %v385 = vrot.slane %v380, %v384
        %v389 = vunpack.c.l.b16 %v378
        %v390 = vunpack.c.l.b16 %v379
        %v391 = vpack.c.b16 %v390, %v389
        %vm393 = vcmask 130048
        %v395 = vsel %vm393, %v377, 0
        %397 = vmatprep.subr.bf16.mxu0 0
        %398 = vmatpush1.bf16.msra.mxu0 %v391
        %399 = vmatprep.subr.bf16.mxu0 0
        %400 = vmatpush1.bf16.msra.mxu0 0
        %401 = vmatprep.subr.bf16.mxu0 0
        %402 = vmatpush1.bf16.msra.mxu0 0
        %403 = vmatprep.subr.bf16.mxu0 0
        %404 = vmatpush1.bf16.msra.mxu0 0
        %405 = vmatprep.subr.bf16.mxu0 0
        %406 = vmatpush1.bf16.msra.mxu0 0
        %407 = vmatprep.subr.bf16.mxu0 0
        %408 = vmatpush1.bf16.msra.mxu0 0
        %409 = vmatprep.subr.bf16.mxu0 0
        %410 = vmatpush1.bf16.msra.mxu0 0
        %411 = vmatprep.subr.bf16.mxu0 0
        %412 = vmatpush1.bf16.msra.mxu0 0
        %413 = vmatprep.subr.bf16.mxu0 0
        %414 = vmatpush1.bf16.msra.mxu0 0
        %415 = vmatprep.subr.bf16.mxu0 0
        %416 = vmatpush1.bf16.msra.mxu0 0
        %417 = vmatprep.subr.bf16.mxu0 0
        %418 = vmatpush1.bf16.msra.mxu0 0
        %419 = vmatprep.subr.bf16.mxu0 0
        %420 = vmatpush1.bf16.msra.mxu0 0
        %421 = vmatprep.subr.bf16.mxu0 0
        %422 = vmatpush1.bf16.msra.mxu0 0
        %423 = vmatprep.subr.bf16.mxu0 0
        %424 = vmatpush1.bf16.msra.mxu0 0
        %425 = vmatprep.subr.bf16.mxu0 0
        %426 = vmatpush1.bf16.msra.mxu0 0
        %427 = vmatprep.subr.bf16.mxu0 0
        %428 = vmatpush1.bf16.msra.mxu0 0
        %429 = vmatprep.mubr.bf16.mxu0 0
        %430 = vmatmul.mubr.bf16.gmra.mrb[0].mxu0 %v395
        %v431 = vpop.f32.mrb[0].mxu0
        %v432 = vadd.f32 %v385, %v431
        %v433 = vpop.f32.mrb[0].mxu0
        %v434 = vpop.f32.mrb[0].mxu0
        %v435 = vadd.f32 %v385, %v434
        %v436 = vpop.f32.mrb[0].mxu0
        %437 = vdwg.mxu0
        %v438 = vld [vmem:[%s368] sm:$0xff]
        %v439 = vpack.c.bf16 %v438, %v438
        %v440 = vld [vmem:[%s5] sm:$0xf]
        %v441 = vld [vmem:[%s5 + $0x4] sm:$0xf]
        %v442 = vld [vmem:[%s6] sm:$0x1]
        %v444 = vlaneseq
        %v445 = vshrl.u32 %v444, 7
        %v446 = vsub.s32 0, %v445
        %v447 = vrot.slane %v442, %v446
        %v451 = vunpack.c.l.b16 %v440
        %v452 = vunpack.c.l.b16 %v441
        %v453 = vpack.c.b16 %v452, %v451
        %v456 = vsel %vm393, %v439, 0
        %458 = vmatprep.subr.bf16.mxu0 0
        %459 = vmatpush1.bf16.msra.mxu0 %v453
        %460 = vmatprep.subr.bf16.mxu0 0
        %461 = vmatpush1.bf16.msra.mxu0 0
        %462 = vmatprep.subr.bf16.mxu0 0
        %463 = vmatpush1.bf16.msra.mxu0 0
        %464 = vmatprep.subr.bf16.mxu0 0
        %465 = vmatpush1.bf16.msra.mxu0 0
        %466 = vmatprep.subr.bf16.mxu0 0
        %467 = vmatpush1.bf16.msra.mxu0 0
        %468 = vmatprep.subr.bf16.mxu0 0
        %469 = vmatpush1.bf16.msra.mxu0 0
        %470 = vmatprep.subr.bf16.mxu0 0
        %471 = vmatpush1.bf16.msra.mxu0 0
        %472 = vmatprep.subr.bf16.mxu0 0
        %473 = vmatpush1.bf16.msra.mxu0 0
        %474 = vmatprep.subr.bf16.mxu0 0
        %475 = vmatpush1.bf16.msra.mxu0 0
        %476 = vmatprep.subr.bf16.mxu0 0
        %477 = vmatpush1.bf16.msra.mxu0 0
        %478 = vmatprep.subr.bf16.mxu0 0
        %479 = vmatpush1.bf16.msra.mxu0 0
        %480 = vmatprep.subr.bf16.mxu0 0
        %481 = vmatpush1.bf16.msra.mxu0 0
        %482 = vmatprep.subr.bf16.mxu0 0
        %483 = vmatpush1.bf16.msra.mxu0 0
        %484 = vmatprep.subr.bf16.mxu0 0
        %485 = vmatpush1.bf16.msra.mxu0 0
        %486 = vmatprep.subr.bf16.mxu0 0
        %487 = vmatpush1.bf16.msra.mxu0 0
        %488 = vmatprep.subr.bf16.mxu0 0
        %489 = vmatpush1.bf16.msra.mxu0 0
        %490 = vmatprep.mubr.bf16.mxu0 0
        %491 = vmatmul.mubr.bf16.gmra.mrb[0].mxu0 %v456
        %v492 = vpop.f32.mrb[0].mxu0
        %v493 = vadd.f32 %v447, %v492
        %v494 = vpop.f32.mrb[0].mxu0
        %v495 = vpop.f32.mrb[0].mxu0
        %v496 = vpop.f32.mrb[0].mxu0
        %497 = vdwg.mxu0
        %v498 = vpack.c.bf16 %v435, %v432
        %499 = vxpose.xlu0.b32.start [1/16] %v432, 128
        %500 = vxpose.xlu0.b32.cont [2/16] %v435, 128
        %501 = vxpose.xlu0.b32.cont [3/16] 0.0, 128
        %502 = vxpose.xlu0.b32.cont [4/16] 0.0, 128
        %503 = vxpose.xlu0.b32.cont [5/16] 0.0, 128
        %504 = vxpose.xlu0.b32.cont [6/16] 0.0, 128
        %505 = vxpose.xlu0.b32.cont [7/16] 0.0, 128
        %506 = vxpose.xlu0.b32.cont [8/16] 0.0, 128
        %507 = vxpose.xlu0.b32.cont [9/16] 0.0, 128
        %508 = vxpose.xlu0.b32.cont [10/16] 0.0, 128
        %509 = vxpose.xlu0.b32.cont [11/16] 0.0, 128
        %510 = vxpose.xlu0.b32.cont [12/16] 0.0, 128
        %511 = vxpose.xlu0.b32.cont [13/16] 0.0, 128
        %512 = vxpose.xlu0.b32.cont [14/16] 0.0, 128
        %513 = vxpose.xlu0.b32.cont [15/16] 0.0, 128
        %514 = vxpose.xlu0.b32.end [16/16] 0.0, 128
        %v515 = vpop.trf.xlu0
        %v516 = vpop.trf.xlu0
        %v517 = vpop.trf.xlu0
        %v518 = vpop.trf.xlu0
        %v519 = vpop.trf.xlu0
        %v520 = vpop.trf.xlu0
        %v521 = vpop.trf.xlu0
        %v522 = vpop.trf.xlu0
        %v523 = vpop.trf.xlu0
        %v524 = vpop.trf.xlu0
        %v525 = vpop.trf.xlu0
        %v526 = vpop.trf.xlu0
        %v527 = vpop.trf.xlu0
        %v528 = vpop.trf.xlu0
        %v529 = vpop.trf.xlu0
        %v530 = vpop.trf.xlu0
        %v531 = vpack.c.bf16 %v516, %v515
        %v532 = vpack.c.bf16 %v518, %v517
        %v533 = vpack.c.bf16 %v493, %v493
        %v534 = vld [vmem:[%s372] sm:$0xf]
        %v535 = vunpack.c.l.bf16 %v534
        %v536 = vld [vmem:[%s7] sm:$0xff]
        %v537 = vld [vmem:[%s7 + $0x8] sm:$0xff]
        %v538 = vld [vmem:[%s7 + $0x10] sm:$0xff]
        %v539 = vld [vmem:[%s7 + $0x18] sm:$0xff]
        %v541 = vpack.i.b16 %v533, %v533
        %v543 = vlaneseq
        %v544 = vshrl.u32 %v543, 7
        %v545 = vsub.s32 0, %v544
        %v546 = vrot.slane %v541, %v545
        %548 = vbcast.lane.c.b16.xlu0 %v546, 256
        %v549 = vpop.permute.xlu0 %548
        %v550 = vshrl.u32 %v533, 16
        %v551 = vpack.i.b16 %v550, %v550
        %v553 = vlaneseq
        %v554 = vshrl.u32 %v553, 7
        %v555 = vsub.s32 0, %v554
        %v556 = vrot.slane %v551, %v555
        %558 = vbcast.lane.c.b16.xlu0 %v556, 256
        %v559 = vpop.permute.xlu0 %558
        %v560 = vlaneseq
        %v561 = vshrl.u32 %v560, 7
        %v562 = vsub.s32 1, %v561
        %v563 = vrot.slane %v541, %v562
        %565 = vbcast.lane.c.b16.xlu0 %v563, 256
        %v566 = vpop.permute.xlu0 %565
        %v567 = vlaneseq
        %v568 = vshrl.u32 %v567, 7
        %v569 = vsub.s32 1, %v568
        %v570 = vrot.slane %v551, %v569
        %572 = vbcast.lane.c.b16.xlu0 %v570, 256
        %v573 = vpop.permute.xlu0 %572
        %v574 = vlaneseq
        %v575 = vshrl.u32 %v574, 7
        %v576 = vsub.s32 2, %v575
        %v577 = vrot.slane %v541, %v576
        %579 = vbcast.lane.c.b16.xlu0 %v577, 256
        %v580 = vpop.permute.xlu0 %579
        %v581 = vlaneseq
        %v582 = vshrl.u32 %v581, 7
        %v583 = vsub.s32 2, %v582
        %v584 = vrot.slane %v551, %v583
        %586 = vbcast.lane.c.b16.xlu0 %v584, 256
        %v587 = vpop.permute.xlu0 %586
        %v588 = vlaneseq
        %v589 = vshrl.u32 %v588, 7
        %v590 = vsub.s32 3, %v589
        %v591 = vrot.slane %v541, %v590
        %593 = vbcast.lane.c.b16.xlu0 %v591, 256
        %v594 = vpop.permute.xlu0 %593
        %v595 = vlaneseq
        %v596 = vshrl.u32 %v595, 7
        %v597 = vsub.s32 3, %v596
        %v598 = vrot.slane %v551, %v597
        %600 = vbcast.lane.c.b16.xlu0 %v598, 256
        %v601 = vpop.permute.xlu0 %600
        %v602 = vadd.bf16 %v549, %v531
        %v603 = vadd.bf16 %v559, %v531
        %v604 = vadd.bf16 %v566, %v531
        %v605 = vadd.bf16 %v573, %v531
        %v606 = vadd.bf16 %v580, %v531
        %v607 = vadd.bf16 %v587, %v531
        %v608 = vadd.bf16 %v594, %v531
        %v609 = vadd.bf16 %v601, %v531
        %vm610 = vcmp.gt.bf16.partialorder %v602, 0
        %vm611 = vcmp.gt.bf16.partialorder %v603, 0
        %vm612 = vcmp.gt.bf16.partialorder %v604, 0
        %vm613 = vcmp.gt.bf16.partialorder %v605, 0
        %vm614 = vcmp.gt.bf16.partialorder %v606, 0
        %vm615 = vcmp.gt.bf16.partialorder %v607, 0
        %vm616 = vcmp.gt.bf16.partialorder %v608, 0
        %vm617 = vcmp.gt.bf16.partialorder %v609, 0
        %v618 = vmul.bf16 %v602, 1045249613
        %v619 = vmul.bf16 %v603, 1045249613
        %v620 = vmul.bf16 %v604, 1045249613
        %v621 = vmul.bf16 %v605, 1045249613
        %v622 = vmul.bf16 %v606, 1045249613
        %v623 = vmul.bf16 %v607, 1045249613
        %v624 = vmul.bf16 %v608, 1045249613
        %v625 = vmul.bf16 %v609, 1045249613
        %v626 = vsel %vm610, %v602, %v618
        %v627 = vsel %vm611, %v603, %v619
        %v628 = vsel %vm612, %v604, %v620
        %v629 = vsel %vm613, %v605, %v621
        %v630 = vsel %vm614, %v606, %v622
        %v631 = vsel %vm615, %v607, %v623
        %v632 = vsel %vm616, %v608, %v624
        %v633 = vsel %vm617, %v609, %v625
        %v634 = vunpack.c.l.bf16 %v626
        %v635 = vunpack.c.l.bf16 %v627
        %v636 = vunpack.c.l.bf16 %v628
        %v637 = vunpack.c.l.bf16 %v629
        %v638 = vunpack.c.l.bf16 %v630
        %v639 = vunpack.c.l.bf16 %v631
        %v640 = vunpack.c.l.bf16 %v632
        %v641 = vunpack.c.l.bf16 %v633
        %643 = vset.pattern.permute.xlu0 0
        %644 = vperm.xlu0 %643, %v536
        %v645 = vpop.permute.xlu0 %644
        %v647 = vmul.f32 %v634, %v645
        %v648 = vmul.f32 %v635, %v645
        %v649 = vmul.f32 %v636, %v645
        %v650 = vmul.f32 %v637, %v645
        %v651 = vmul.f32 %v638, %v645
        %v652 = vmul.f32 %v639, %v645
        %v653 = vmul.f32 %v640, %v645
        %v654 = vmul.f32 %v641, %v645
        %v655 = vsel %vm393, %v647, 0.0
        %v656 = vrot.slane %v655, 4
        %v657 = vadd.f32 %v655, %v656
        %v658 = vrot.slane %v657, 2
        %v659 = vadd.f32 %v657, %v658
        %v660 = vrot.slane %v659, 1
        %v661 = vadd.f32 %v659, %v660
        %v662 = vsel %vm393, %v648, 0.0
        %v663 = vrot.slane %v662, 4
        %v664 = vadd.f32 %v662, %v663
        %v665 = vrot.slane %v664, 2
        %v666 = vadd.f32 %v664, %v665
        %v667 = vrot.slane %v666, 1
        %v668 = vadd.f32 %v666, %v667
        %v669 = vsel %vm393, %v649, 0.0
        %v670 = vrot.slane %v669, 4
        %v671 = vadd.f32 %v669, %v670
        %v672 = vrot.slane %v671, 2
        %v673 = vadd.f32 %v671, %v672
        %v674 = vrot.slane %v673, 1
        %v675 = vadd.f32 %v673, %v674
        %v676 = vsel %vm393, %v650, 0.0
        %v677 = vrot.slane %v676, 4
        %v678 = vadd.f32 %v676, %v677
        %v679 = vrot.slane %v678, 2
        %v680 = vadd.f32 %v678, %v679
        %v681 = vrot.slane %v680, 1
        %v682 = vadd.f32 %v680, %v681
        %v683 = vsel %vm393, %v651, 0.0
        %v684 = vrot.slane %v683, 4
        %v685 = vadd.f32 %v683, %v684
        %v686 = vrot.slane %v685, 2
        %v687 = vadd.f32 %v685, %v686
        %v688 = vrot.slane %v687, 1
        %v689 = vadd.f32 %v687, %v688
        %v690 = vsel %vm393, %v652, 0.0
        %v691 = vrot.slane %v690, 4
        %v692 = vadd.f32 %v690, %v691
        %v693 = vrot.slane %v692, 2
        %v694 = vadd.f32 %v692, %v693
        %v695 = vrot.slane %v694, 1
        %v696 = vadd.f32 %v694, %v695
        %v697 = vsel %vm393, %v653, 0.0
        %v698 = vrot.slane %v697, 4
        %v699 = vadd.f32 %v697, %v698
        %v700 = vrot.slane %v699, 2
        %v701 = vadd.f32 %v699, %v700
        %v702 = vrot.slane %v701, 1
        %v703 = vadd.f32 %v701, %v702
        %v704 = vsel %vm393, %v654, 0.0
        %v705 = vrot.slane %v704, 4
        %v706 = vadd.f32 %v704, %v705
        %v707 = vrot.slane %v706, 2
        %v708 = vadd.f32 %v706, %v707
        %v709 = vrot.slane %v708, 1
        %v710 = vadd.f32 %v708, %v709
        %v712 = vrot.slane %v535, 1
        %v713 = vrot.slane %v535, 2
        %v714 = vrot.slane %v535, 3
        %v715 = vrot.slane %v535, 4
        %v716 = vrot.slane %v535, 5
        %v717 = vrot.slane %v535, 6
        %v718 = vrot.slane %v535, 7
        %v727 = vadd.f32 %v661, %v535
        %v728 = vadd.f32 %v668, %v712
        %v729 = vadd.f32 %v675, %v713
        %v730 = vadd.f32 %v682, %v714
        %v731 = vadd.f32 %v689, %v715
        %v732 = vadd.f32 %v696, %v716
        %v733 = vadd.f32 %v703, %v717
        %v734 = vadd.f32 %v710, %v718
        %v743 = vrot.slane %v728, 7
        %vm744 = vcmask 1041409
        %v745 = vsel %vm744, %v743, %v727
        %v746 = vrot.slane %v729, 6
        %vm747 = vcmask 1042434
        %v748 = vsel %vm747, %v746, %v745
        %v749 = vrot.slane %v730, 5
        %vm750 = vcmask 1043459
        %v751 = vsel %vm750, %v749, %v748
        %v752 = vrot.slane %v731, 4
        %vm753 = vcmask 1044484
        %v754 = vsel %vm753, %v752, %v751
        %v755 = vrot.slane %v732, 3
        %vm756 = vcmask 1045509
        %v757 = vsel %vm756, %v755, %v754
        %v758 = vrot.slane %v733, 2
        %vm759 = vcmask 1046534
        %v760 = vsel %vm759, %v758, %v757
        %v761 = vrot.slane %v734, 1
        %vm762 = vcmask 1047559
        %v763 = vsel %vm762, %v761, %v760
        %v765 = vsel %vm393, %v763, -inf
        %766 = vmax.xlane.f32.xlu0 %v765
        %v767 = vpop.xlane.xlu0 %766
        %v769 = vrot.slane %v767, 1
        %v770 = vrot.slane %v767, 2
        %v771 = vrot.slane %v767, 3
        %v772 = vrot.slane %v767, 4
        %v773 = vrot.slane %v767, 5
        %v774 = vrot.slane %v767, 6
        %v775 = vrot.slane %v767, 7
        %v784 = vsub.f32 %v727, %v767
        %v785 = vsub.f32 %v728, %v769
        %v786 = vsub.f32 %v729, %v770
        %v787 = vsub.f32 %v730, %v771
        %v788 = vsub.f32 %v731, %v772
        %v789 = vsub.f32 %v732, %v773
        %v790 = vsub.f32 %v733, %v774
        %v791 = vsub.f32 %v734, %v775
        %v792 = vmul.f32 %v784, 1.442695
        %v793 = vpow.pop %v792
        %v794 = vmul.f32 %v785, 1.442695
        %v795 = vpow.pop %v794
        %v796 = vmul.f32 %v786, 1.442695
        %v797 = vpow.pop %v796
        %v798 = vmul.f32 %v787, 1.442695
        %v799 = vpow.pop %v798
        %v800 = vmul.f32 %v788, 1.442695
        %v801 = vpow.pop %v800
        %v802 = vmul.f32 %v789, 1.442695
        %v803 = vpow.pop %v802
        %v804 = vmul.f32 %v790, 1.442695
        %v805 = vpow.pop %v804
        %v806 = vmul.f32 %v791, 1.442695
        %v807 = vpow.pop %v806
        %v816 = vrot.slane %v795, 7
        %v817 = vsel %vm744, %v816, %v793
        %v818 = vrot.slane %v797, 6
        %v819 = vsel %vm747, %v818, %v817
        %v820 = vrot.slane %v799, 5
        %v821 = vsel %vm750, %v820, %v819
        %v822 = vrot.slane %v801, 4
        %v823 = vsel %vm753, %v822, %v821
        %v824 = vrot.slane %v803, 3
        %v825 = vsel %vm756, %v824, %v823
        %v826 = vrot.slane %v805, 2
        %v827 = vsel %vm759, %v826, %v825
        %v828 = vrot.slane %v807, 1
        %v829 = vsel %vm762, %v828, %v827
        %v831 = vsel %vm393, %v829, 0.0
        %832 = vadd.xlane.f32.xlu0 %v831
        %v833 = vpop.xlane.xlu0 %832
        %v834 = vpack.c.bf16 %v793, %v793
        %v835 = vpack.c.bf16 %v795, %v795
        %v836 = vpack.c.bf16 %v797, %v797
        %v837 = vpack.c.bf16 %v799, %v799
        %v838 = vpack.c.bf16 %v801, %v801
        %v839 = vpack.c.bf16 %v803, %v803
        %v840 = vpack.c.bf16 %v805, %v805
        %v841 = vpack.c.bf16 %v807, %v807
        %v850 = vunpack.c.l.b16 %v834
        %v851 = vunpack.c.l.b16 %v835
        %v852 = vunpack.c.l.b16 %v836
        %v853 = vunpack.c.l.b16 %v837
        %v854 = vunpack.c.l.b16 %v838
        %v855 = vunpack.c.l.b16 %v839
        %v856 = vunpack.c.l.b16 %v840
        %v857 = vunpack.c.l.b16 %v841
        %v858 = vrot.slane %v851, 7
        %v859 = vsel %vm744, %v858, %v850
        %v860 = vrot.slane %v852, 6
        %v861 = vsel %vm747, %v860, %v859
        %v862 = vrot.slane %v853, 5
        %v863 = vsel %vm750, %v862, %v861
        %v864 = vrot.slane %v854, 4
        %v865 = vsel %vm753, %v864, %v863
        %v866 = vrot.slane %v855, 3
        %v867 = vsel %vm756, %v866, %v865
        %v868 = vrot.slane %v856, 2
        %v869 = vsel %vm759, %v868, %v867
        %v870 = vrot.slane %v857, 1
        %v871 = vsel %vm762, %v870, %v869
        %v872 = vpack.c.b16 %v871, %v871
        %v874 = vsel %vm393, %v872, 0
        %876 = vmatprep.subr.bf16.mxu0 0
        %877 = vmatpush1.bf16.msra.mxu0 %v498
        %878 = vmatprep.subr.bf16.mxu0 0
        %879 = vmatpush1.bf16.msra.mxu0 0
        %880 = vmatprep.subr.bf16.mxu0 0
        %881 = vmatpush1.bf16.msra.mxu0 0
        %882 = vmatprep.subr.bf16.mxu0 0
        %883 = vmatpush1.bf16.msra.mxu0 0
        %884 = vmatprep.subr.bf16.mxu0 0
        %885 = vmatpush1.bf16.msra.mxu0 0
        %886 = vmatprep.subr.bf16.mxu0 0
        %887 = vmatpush1.bf16.msra.mxu0 0
        %888 = vmatprep.subr.bf16.mxu0 0
        %889 = vmatpush1.bf16.msra.mxu0 0
        %890 = vmatprep.subr.bf16.mxu0 0
        %891 = vmatpush1.bf16.msra.mxu0 0
        %892 = vmatprep.subr.bf16.mxu0 0
        %893 = vmatpush1.bf16.msra.mxu0 0
        %894 = vmatprep.subr.bf16.mxu0 0
        %895 = vmatpush1.bf16.msra.mxu0 0
        %896 = vmatprep.subr.bf16.mxu0 0
        %897 = vmatpush1.bf16.msra.mxu0 0
        %898 = vmatprep.subr.bf16.mxu0 0
        %899 = vmatpush1.bf16.msra.mxu0 0
        %900 = vmatprep.subr.bf16.mxu0 0
        %901 = vmatpush1.bf16.msra.mxu0 0
        %902 = vmatprep.subr.bf16.mxu0 0
        %903 = vmatpush1.bf16.msra.mxu0 0
        %904 = vmatprep.subr.bf16.mxu0 0
        %905 = vmatpush1.bf16.msra.mxu0 0
        %906 = vmatprep.subr.bf16.mxu0 0
        %907 = vmatpush1.bf16.msra.mxu0 0
        %908 = vmatprep.mubr.bf16.mxu0 0
        %909 = vmatmul.mubr.bf16.gmra.mrb[0].mxu0 %v874
        %v910 = vpop.f32.mrb[0].mxu0
        %v911 = vadd.f32 0.0, %v910
        %v912 = vpop.f32.mrb[0].mxu0
        %v913 = vpop.f32.mrb[0].mxu0
        %v914 = vpop.f32.mrb[0].mxu0
        %915 = vdwg.mxu0
        %v916 = vrcp.pop %v833
        %v917 = vmul.f32 %v911, %v916
        %s919 = sor.u32 256, 8
        %920 = vbcast.lane.c.b16.xlu0 %v546, %s919
        %v921 = vpop.permute.xlu0 %920
        %s923 = sor.u32 256, 8
        %924 = vbcast.lane.c.b16.xlu0 %v556, %s923
        %v925 = vpop.permute.xlu0 %924
        %s927 = sor.u32 256, 8
        %928 = vbcast.lane.c.b16.xlu0 %v563, %s927
        %v929 = vpop.permute.xlu0 %928
        %s931 = sor.u32 256, 8
        %932 = vbcast.lane.c.b16.xlu0 %v570, %s931
        %v933 = vpop.permute.xlu0 %932
        %s935 = sor.u32 256, 8
        %936 = vbcast.lane.c.b16.xlu0 %v577, %s935
        %v937 = vpop.permute.xlu0 %936
        %s939 = sor.u32 256, 8
        %940 = vbcast.lane.c.b16.xlu0 %v584, %s939
        %v941 = vpop.permute.xlu0 %940
        %s943 = sor.u32 256, 8
        %944 = vbcast.lane.c.b16.xlu0 %v591, %s943
        %v945 = vpop.permute.xlu0 %944
        %s947 = sor.u32 256, 8
        %948 = vbcast.lane.c.b16.xlu0 %v598, %s947
        %v949 = vpop.permute.xlu0 %948
        %v951 = vrot.slane %v531, 4
        %v953 = vadd.bf16 %v921, %v951
        %v954 = vadd.bf16 %v925, %v951
        %v955 = vadd.bf16 %v929, %v951
        %v956 = vadd.bf16 %v933, %v951
        %v957 = vadd.bf16 %v937, %v951
        %v958 = vadd.bf16 %v941, %v951
        %v959 = vadd.bf16 %v945, %v951
        %v960 = vadd.bf16 %v949, %v951
        %vm961 = vcmp.gt.bf16.partialorder %v953, 0
        %vm962 = vcmp.gt.bf16.partialorder %v954, 0
        %vm963 = vcmp.gt.bf16.partialorder %v955, 0
        %vm964 = vcmp.gt.bf16.partialorder %v956, 0
        %vm965 = vcmp.gt.bf16.partialorder %v957, 0
        %vm966 = vcmp.gt.bf16.partialorder %v958, 0
        %vm967 = vcmp.gt.bf16.partialorder %v959, 0
        %vm968 = vcmp.gt.bf16.partialorder %v960, 0
        %v969 = vmul.bf16 %v953, 1045249613
        %v970 = vmul.bf16 %v954, 1045249613
        %v971 = vmul.bf16 %v955, 1045249613
        %v972 = vmul.bf16 %v956, 1045249613
        %v973 = vmul.bf16 %v957, 1045249613
        %v974 = vmul.bf16 %v958, 1045249613
        %v975 = vmul.bf16 %v959, 1045249613
        %v976 = vmul.bf16 %v960, 1045249613
        %v977 = vsel %vm961, %v953, %v969
        %v978 = vsel %vm962, %v954, %v970
        %v979 = vsel %vm963, %v955, %v971
        %v980 = vsel %vm964, %v956, %v972
        %v981 = vsel %vm965, %v957, %v973
        %v982 = vsel %vm966, %v958, %v974
        %v983 = vsel %vm967, %v959, %v975
        %v984 = vsel %vm968, %v960, %v976
        %v985 = vunpack.c.l.bf16 %v977
        %v986 = vunpack.c.l.bf16 %v978
        %v987 = vunpack.c.l.bf16 %v979
        %v988 = vunpack.c.l.bf16 %v980
        %v989 = vunpack.c.l.bf16 %v981
        %v990 = vunpack.c.l.bf16 %v982
        %v991 = vunpack.c.l.bf16 %v983
        %v992 = vunpack.c.l.bf16 %v984
        %994 = vset.pattern.permute.xlu0 0
        %995 = vperm.xlu0 %994, %v537
        %v996 = vpop.permute.xlu0 %995
        %v998 = vmul.f32 %v985, %v996
        %v999 = vmul.f32 %v986, %v996
        %v1000 = vmul.f32 %v987, %v996
        %v1001 = vmul.f32 %v988, %v996
        %v1002 = vmul.f32 %v989, %v996
        %v1003 = vmul.f32 %v990, %v996
        %v1004 = vmul.f32 %v991, %v996
        %v1005 = vmul.f32 %v992, %v996
        %v1006 = vsel %vm393, %v998, 0.0
        %v1007 = vrot.slane %v1006, 4
        %v1008 = vadd.f32 %v1006, %v1007
        %v1009 = vrot.slane %v1008, 2
        %v1010 = vadd.f32 %v1008, %v1009
        %v1011 = vrot.slane %v1010, 1
        %v1012 = vadd.f32 %v1010, %v1011
        %v1013 = vsel %vm393, %v999, 0.0
        %v1014 = vrot.slane %v1013, 4
        %v1015 = vadd.f32 %v1013, %v1014
        %v1016 = vrot.slane %v1015, 2
        %v1017 = vadd.f32 %v1015, %v1016
        %v1018 = vrot.slane %v1017, 1
        %v1019 = vadd.f32 %v1017, %v1018
        %v1020 = vsel %vm393, %v1000, 0.0
        %v1021 = vrot.slane %v1020, 4
        %v1022 = vadd.f32 %v1020, %v1021
        %v1023 = vrot.slane %v1022, 2
        %v1024 = vadd.f32 %v1022, %v1023
        %v1025 = vrot.slane %v1024, 1
        %v1026 = vadd.f32 %v1024, %v1025
        %v1027 = vsel %vm393, %v1001, 0.0
        %v1028 = vrot.slane %v1027, 4
        %v1029 = vadd.f32 %v1027, %v1028
        %v1030 = vrot.slane %v1029, 2
        %v1031 = vadd.f32 %v1029, %v1030
        %v1032 = vrot.slane %v1031, 1
        %v1033 = vadd.f32 %v1031, %v1032
        %v1034 = vsel %vm393, %v1002, 0.0
        %v1035 = vrot.slane %v1034, 4
        %v1036 = vadd.f32 %v1034, %v1035
        %v1037 = vrot.slane %v1036, 2
        %v1038 = vadd.f32 %v1036, %v1037
        %v1039 = vrot.slane %v1038, 1
        %v1040 = vadd.f32 %v1038, %v1039
        %v1041 = vsel %vm393, %v1003, 0.0
        %v1042 = vrot.slane %v1041, 4
        %v1043 = vadd.f32 %v1041, %v1042
        %v1044 = vrot.slane %v1043, 2
        %v1045 = vadd.f32 %v1043, %v1044
        %v1046 = vrot.slane %v1045, 1
        %v1047 = vadd.f32 %v1045, %v1046
        %v1048 = vsel %vm393, %v1004, 0.0
        %v1049 = vrot.slane %v1048, 4
        %v1050 = vadd.f32 %v1048, %v1049
        %v1051 = vrot.slane %v1050, 2
        %v1052 = vadd.f32 %v1050, %v1051
        %v1053 = vrot.slane %v1052, 1
        %v1054 = vadd.f32 %v1052, %v1053
        %v1055 = vsel %vm393, %v1005, 0.0
        %v1056 = vrot.slane %v1055, 4
        %v1057 = vadd.f32 %v1055, %v1056
        %v1058 = vrot.slane %v1057, 2
        %v1059 = vadd.f32 %v1057, %v1058
        %v1060 = vrot.slane %v1059, 1
        %v1061 = vadd.f32 %v1059, %v1060
        %v1062 = vadd.f32 %v1012, %v535
        %v1063 = vadd.f32 %v1019, %v712
        %v1064 = vadd.f32 %v1026, %v713
        %v1065 = vadd.f32 %v1033, %v714
        %v1066 = vadd.f32 %v1040, %v715
        %v1067 = vadd.f32 %v1047, %v716
        %v1068 = vadd.f32 %v1054, %v717
        %v1069 = vadd.f32 %v1061, %v718
        %v1078 = vrot.slane %v1063, 7
        %v1079 = vsel %vm744, %v1078, %v1062
        %v1080 = vrot.slane %v1064, 6
        %v1081 = vsel %vm747, %v1080, %v1079
        %v1082 = vrot.slane %v1065, 5
        %v1083 = vsel %vm750, %v1082, %v1081
        %v1084 = vrot.slane %v1066, 4
        %v1085 = vsel %vm753, %v1084, %v1083
        %v1086 = vrot.slane %v1067, 3
        %v1087 = vsel %vm756, %v1086, %v1085
        %v1088 = vrot.slane %v1068, 2
        %v1089 = vsel %vm759, %v1088, %v1087
        %v1090 = vrot.slane %v1069, 1
        %v1091 = vsel %vm762, %v1090, %v1089
        %v1093 = vsel %vm393, %v1091, -inf
        %1094 = vmax.xlane.f32.xlu0 %v1093
        %v1095 = vpop.xlane.xlu0 %1094
        %v1097 = vrot.slane %v1095, 1
        %v1098 = vrot.slane %v1095, 2
        %v1099 = vrot.slane %v1095, 3
        %v1100 = vrot.slane %v1095, 4
        %v1101 = vrot.slane %v1095, 5
        %v1102 = vrot.slane %v1095, 6
        %v1103 = vrot.slane %v1095, 7
        %v1112 = vsub.f32 %v1062, %v1095
        %v1113 = vsub.f32 %v1063, %v1097
        %v1114 = vsub.f32 %v1064, %v1098
        %v1115 = vsub.f32 %v1065, %v1099
        %v1116 = vsub.f32 %v1066, %v1100
        %v1117 = vsub.f32 %v1067, %v1101
        %v1118 = vsub.f32 %v1068, %v1102
        %v1119 = vsub.f32 %v1069, %v1103
        %v1120 = vmul.f32 %v1112, 1.442695
        %v1121 = vpow.pop %v1120
        %v1122 = vmul.f32 %v1113, 1.442695
        %v1123 = vpow.pop %v1122
        %v1124 = vmul.f32 %v1114, 1.442695
        %v1125 = vpow.pop %v1124
        %v1126 = vmul.f32 %v1115, 1.442695
        %v1127 = vpow.pop %v1126
        %v1128 = vmul.f32 %v1116, 1.442695
        %v1129 = vpow.pop %v1128
        %v1130 = vmul.f32 %v1117, 1.442695
        %v1131 = vpow.pop %v1130
        %v1132 = vmul.f32 %v1118, 1.442695
        %v1133 = vpow.pop %v1132
        %v1134 = vmul.f32 %v1119, 1.442695
        %v1135 = vpow.pop %v1134
        %v1144 = vrot.slane %v1123, 7
        %v1145 = vsel %vm744, %v1144, %v1121
        %v1146 = vrot.slane %v1125, 6
        %v1147 = vsel %vm747, %v1146, %v1145
        %v1148 = vrot.slane %v1127, 5
        %v1149 = vsel %vm750, %v1148, %v1147
        %v1150 = vrot.slane %v1129, 4
        %v1151 = vsel %vm753, %v1150, %v1149
        %v1152 = vrot.slane %v1131, 3
        %v1153 = vsel %vm756, %v1152, %v1151
        %v1154 = vrot.slane %v1133, 2
        %v1155 = vsel %vm759, %v1154, %v1153
        %v1156 = vrot.slane %v1135, 1
        %v1157 = vsel %vm762, %v1156, %v1155
        %v1159 = vsel %vm393, %v1157, 0.0
        %1160 = vadd.xlane.f32.xlu0 %v1159
        %v1161 = vpop.xlane.xlu0 %1160
        %v1162 = vpack.c.bf16 %v1121, %v1121
        %v1163 = vpack.c.bf16 %v1123, %v1123
        %v1164 = vpack.c.bf16 %v1125, %v1125
        %v1165 = vpack.c.bf16 %v1127, %v1127
        %v1166 = vpack.c.bf16 %v1129, %v1129
        %v1167 = vpack.c.bf16 %v1131, %v1131
        %v1168 = vpack.c.bf16 %v1133, %v1133
        %v1169 = vpack.c.bf16 %v1135, %v1135
        %v1178 = vunpack.c.l.b16 %v1162
        %v1179 = vunpack.c.l.b16 %v1163
        %v1180 = vunpack.c.l.b16 %v1164
        %v1181 = vunpack.c.l.b16 %v1165
        %v1182 = vunpack.c.l.b16 %v1166
        %v1183 = vunpack.c.l.b16 %v1167
        %v1184 = vunpack.c.l.b16 %v1168
        %v1185 = vunpack.c.l.b16 %v1169
        %v1186 = vrot.slane %v1179, 7
        %v1187 = vsel %vm744, %v1186, %v1178
        %v1188 = vrot.slane %v1180, 6
        %v1189 = vsel %vm747, %v1188, %v1187
        %v1190 = vrot.slane %v1181, 5
        %v1191 = vsel %vm750, %v1190, %v1189
        %v1192 = vrot.slane %v1182, 4
        %v1193 = vsel %vm753, %v1192, %v1191
        %v1194 = vrot.slane %v1183, 3
        %v1195 = vsel %vm756, %v1194, %v1193
        %v1196 = vrot.slane %v1184, 2
        %v1197 = vsel %vm759, %v1196, %v1195
        %v1198 = vrot.slane %v1185, 1
        %v1199 = vsel %vm762, %v1198, %v1197
        %v1200 = vpack.c.b16 %v1199, %v1199
        %1202 = vrot.lane.b32.xlu0 %v498, 120
        %v1203 = vpop.permute.xlu0 %1202
        %v1206 = vsel %vm393, %v1200, 0
        %1208 = vmatprep.subr.bf16.mxu0 0
        %1209 = vmatpush1.bf16.msra.mxu0 %v1203
        %1210 = vmatprep.subr.bf16.mxu0 0
        %1211 = vmatpush1.bf16.msra.mxu0 0
        %1212 = vmatprep.subr.bf16.mxu0 0
        %1213 = vmatpush1.bf16.msra.mxu0 0
        %1214 = vmatprep.subr.bf16.mxu0 0
        %1215 = vmatpush1.bf16.msra.mxu0 0
        %1216 = vmatprep.subr.bf16.mxu0 0
        %1217 = vmatpush1.bf16.msra.mxu0 0
        %1218 = vmatprep.subr.bf16.mxu0 0
        %1219 = vmatpush1.bf16.msra.mxu0 0
        %1220 = vmatprep.subr.bf16.mxu0 0
        %1221 = vmatpush1.bf16.msra.mxu0 0
        %1222 = vmatprep.subr.bf16.mxu0 0
        %1223 = vmatpush1.bf16.msra.mxu0 0
        %1224 = vmatprep.subr.bf16.mxu0 0
        %1225 = vmatpush1.bf16.msra.mxu0 0
        %1226 = vmatprep.subr.bf16.mxu0 0
        %1227 = vmatpush1.bf16.msra.mxu0 0
        %1228 = vmatprep.subr.bf16.mxu0 0
        %1229 = vmatpush1.bf16.msra.mxu0 0
        %1230 = vmatprep.subr.bf16.mxu0 0
        %1231 = vmatpush1.bf16.msra.mxu0 0
        %1232 = vmatprep.subr.bf16.mxu0 0
        %1233 = vmatpush1.bf16.msra.mxu0 0
        %1234 = vmatprep.subr.bf16.mxu0 0
        %1235 = vmatpush1.bf16.msra.mxu0 0
        %1236 = vmatprep.subr.bf16.mxu0 0
        %1237 = vmatpush1.bf16.msra.mxu0 0
        %1238 = vmatprep.subr.bf16.mxu0 0
        %1239 = vmatpush1.bf16.msra.mxu0 0
        %1240 = vmatprep.mubr.bf16.mxu0 0
        %1241 = vmatmul.mubr.bf16.gmra.mrb[0].mxu0 %v1206
        %v1242 = vpop.f32.mrb[0].mxu0
        %v1243 = vadd.f32 0.0, %v1242
        %v1244 = vpop.f32.mrb[0].mxu0
        %v1245 = vpop.f32.mrb[0].mxu0
        %v1246 = vpop.f32.mrb[0].mxu0
        %1247 = vdwg.mxu0
        %v1248 = vrcp.pop %v1161
        %v1249 = vmul.f32 %v1243, %v1248
        %s1251 = sor.u32 256, 16
        %1252 = vbcast.lane.c.b16.xlu0 %v546, %s1251
        %v1253 = vpop.permute.xlu0 %1252
        %s1255 = sor.u32 256, 16
        %1256 = vbcast.lane.c.b16.xlu0 %v556, %s1255
        %v1257 = vpop.permute.xlu0 %1256
        %s1259 = sor.u32 256, 16
        %1260 = vbcast.lane.c.b16.xlu0 %v563, %s1259
        %v1261 = vpop.permute.xlu0 %1260
        %s1263 = sor.u32 256, 16
        %1264 = vbcast.lane.c.b16.xlu0 %v570, %s1263
        %v1265 = vpop.permute.xlu0 %1264
        %s1267 = sor.u32 256, 16
        %1268 = vbcast.lane.c.b16.xlu0 %v577, %s1267
        %v1269 = vpop.permute.xlu0 %1268
        %s1271 = sor.u32 256, 16
        %1272 = vbcast.lane.c.b16.xlu0 %v584, %s1271
        %v1273 = vpop.permute.xlu0 %1272
        %s1275 = sor.u32 256, 16
        %1276 = vbcast.lane.c.b16.xlu0 %v591, %s1275
        %v1277 = vpop.permute.xlu0 %1276
        %s1279 = sor.u32 256, 16
        %1280 = vbcast.lane.c.b16.xlu0 %v598, %s1279
        %v1281 = vpop.permute.xlu0 %1280
        %v1282 = vadd.bf16 %v1253, %v532
        %v1283 = vadd.bf16 %v1257, %v532
        %v1284 = vadd.bf16 %v1261, %v532
        %v1285 = vadd.bf16 %v1265, %v532
        %v1286 = vadd.bf16 %v1269, %v532
        %v1287 = vadd.bf16 %v1273, %v532
        %v1288 = vadd.bf16 %v1277, %v532
        %v1289 = vadd.bf16 %v1281, %v532
        %vm1290 = vcmp.gt.bf16.partialorder %v1282, 0
        %vm1291 = vcmp.gt.bf16.partialorder %v1283, 0
        %vm1292 = vcmp.gt.bf16.partialorder %v1284, 0
        %vm1293 = vcmp.gt.bf16.partialorder %v1285, 0
        %vm1294 = vcmp.gt.bf16.partialorder %v1286, 0
        %vm1295 = vcmp.gt.bf16.partialorder %v1287, 0
        %vm1296 = vcmp.gt.bf16.partialorder %v1288, 0
        %vm1297 = vcmp.gt.bf16.partialorder %v1289, 0
        %v1298 = vmul.bf16 %v1282, 1045249613
        %v1299 = vmul.bf16 %v1283, 1045249613
        %v1300 = vmul.bf16 %v1284, 1045249613
        %v1301 = vmul.bf16 %v1285, 1045249613
        %v1302 = vmul.bf16 %v1286, 1045249613
        %v1303 = vmul.bf16 %v1287, 1045249613
        %v1304 = vmul.bf16 %v1288, 1045249613
        %v1305 = vmul.bf16 %v1289, 1045249613
        %v1306 = vsel %vm1290, %v1282, %v1298
        %v1307 = vsel %vm1291, %v1283, %v1299
        %v1308 = vsel %vm1292, %v1284, %v1300
        %v1309 = vsel %vm1293, %v1285, %v1301
        %v1310 = vsel %vm1294, %v1286, %v1302
        %v1311 = vsel %vm1295, %v1287, %v1303
        %v1312 = vsel %vm1296, %v1288, %v1304
        %v1313 = vsel %vm1297, %v1289, %v1305
        %v1314 = vunpack.c.l.bf16 %v1306
        %v1315 = vunpack.c.l.bf16 %v1307
        %v1316 = vunpack.c.l.bf16 %v1308
        %v1317 = vunpack.c.l.bf16 %v1309
        %v1318 = vunpack.c.l.bf16 %v1310
        %v1319 = vunpack.c.l.bf16 %v1311
        %v1320 = vunpack.c.l.bf16 %v1312
        %v1321 = vunpack.c.l.bf16 %v1313
        %1323 = vset.pattern.permute.xlu0 0
        %1324 = vperm.xlu0 %1323, %v538
        %v1325 = vpop.permute.xlu0 %1324
        %v1327 = vmul.f32 %v1314, %v1325
        %v1328 = vmul.f32 %v1315, %v1325
        %v1329 = vmul.f32 %v1316, %v1325
        %v1330 = vmul.f32 %v1317, %v1325
        %v1331 = vmul.f32 %v1318, %v1325
        %v1332 = vmul.f32 %v1319, %v1325
        %v1333 = vmul.f32 %v1320, %v1325
        %v1334 = vmul.f32 %v1321, %v1325
        %v1335 = vsel %vm393, %v1327, 0.0
        %v1336 = vrot.slane %v1335, 4
        %v1337 = vadd.f32 %v1335, %v1336
        %v1338 = vrot.slane %v1337, 2
        %v1339 = vadd.f32 %v1337, %v1338
        %v1340 = vrot.slane %v1339, 1
        %v1341 = vadd.f32 %v1339, %v1340
        %v1342 = vsel %vm393, %v1328, 0.0
        %v1343 = vrot.slane %v1342, 4
        %v1344 = vadd.f32 %v1342, %v1343
        %v1345 = vrot.slane %v1344, 2
        %v1346 = vadd.f32 %v1344, %v1345
        %v1347 = vrot.slane %v1346, 1
        %v1348 = vadd.f32 %v1346, %v1347
        %v1349 = vsel %vm393, %v1329, 0.0
        %v1350 = vrot.slane %v1349, 4
        %v1351 = vadd.f32 %v1349, %v1350
        %v1352 = vrot.slane %v1351, 2
        %v1353 = vadd.f32 %v1351, %v1352
        %v1354 = vrot.slane %v1353, 1
        %v1355 = vadd.f32 %v1353, %v1354
        %v1356 = vsel %vm393, %v1330, 0.0
        %v1357 = vrot.slane %v1356, 4
        %v1358 = vadd.f32 %v1356, %v1357
        %v1359 = vrot.slane %v1358, 2
        %v1360 = vadd.f32 %v1358, %v1359
        %v1361 = vrot.slane %v1360, 1
        %v1362 = vadd.f32 %v1360, %v1361
        %v1363 = vsel %vm393, %v1331, 0.0
        %v1364 = vrot.slane %v1363, 4
        %v1365 = vadd.f32 %v1363, %v1364
        %v1366 = vrot.slane %v1365, 2
        %v1367 = vadd.f32 %v1365, %v1366
        %v1368 = vrot.slane %v1367, 1
        %v1369 = vadd.f32 %v1367, %v1368
        %v1370 = vsel %vm393, %v1332, 0.0
        %v1371 = vrot.slane %v1370, 4
        %v1372 = vadd.f32 %v1370, %v1371
        %v1373 = vrot.slane %v1372, 2
        %v1374 = vadd.f32 %v1372, %v1373
        %v1375 = vrot.slane %v1374, 1
        %v1376 = vadd.f32 %v1374, %v1375
        %v1377 = vsel %vm393, %v1333, 0.0
        %v1378 = vrot.slane %v1377, 4
        %v1379 = vadd.f32 %v1377, %v1378
        %v1380 = vrot.slane %v1379, 2
        %v1381 = vadd.f32 %v1379, %v1380
        %v1382 = vrot.slane %v1381, 1
        %v1383 = vadd.f32 %v1381, %v1382
        %v1384 = vsel %vm393, %v1334, 0.0
        %v1385 = vrot.slane %v1384, 4
        %v1386 = vadd.f32 %v1384, %v1385
        %v1387 = vrot.slane %v1386, 2
        %v1388 = vadd.f32 %v1386, %v1387
        %v1389 = vrot.slane %v1388, 1
        %v1390 = vadd.f32 %v1388, %v1389
        %v1391 = vadd.f32 %v1341, %v535
        %v1392 = vadd.f32 %v1348, %v712
        %v1393 = vadd.f32 %v1355, %v713
        %v1394 = vadd.f32 %v1362, %v714
        %v1395 = vadd.f32 %v1369, %v715
        %v1396 = vadd.f32 %v1376, %v716
        %v1397 = vadd.f32 %v1383, %v717
        %v1398 = vadd.f32 %v1390, %v718
        %v1407 = vrot.slane %v1392, 7
        %v1408 = vsel %vm744, %v1407, %v1391
        %v1409 = vrot.slane %v1393, 6
        %v1410 = vsel %vm747, %v1409, %v1408
        %v1411 = vrot.slane %v1394, 5
        %v1412 = vsel %vm750, %v1411, %v1410
        %v1413 = vrot.slane %v1395, 4
        %v1414 = vsel %vm753, %v1413, %v1412
        %v1415 = vrot.slane %v1396, 3
        %v1416 = vsel %vm756, %v1415, %v1414
        %v1417 = vrot.slane %v1397, 2
        %v1418 = vsel %vm759, %v1417, %v1416
        %v1419 = vrot.slane %v1398, 1
        %v1420 = vsel %vm762, %v1419, %v1418
        %v1422 = vsel %vm393, %v1420, -inf
        %1423 = vmax.xlane.f32.xlu0 %v1422
        %v1424 = vpop.xlane.xlu0 %1423
        %v1426 = vrot.slane %v1424, 1
        %v1427 = vrot.slane %v1424, 2
        %v1428 = vrot.slane %v1424, 3
        %v1429 = vrot.slane %v1424, 4
        %v1430 = vrot.slane %v1424, 5
        %v1431 = vrot.slane %v1424, 6
        %v1432 = vrot.slane %v1424, 7
        %v1441 = vsub.f32 %v1391, %v1424
        %v1442 = vsub.f32 %v1392, %v1426
        %v1443 = vsub.f32 %v1393, %v1427
        %v1444 = vsub.f32 %v1394, %v1428
        %v1445 = vsub.f32 %v1395, %v1429
        %v1446 = vsub.f32 %v1396, %v1430
        %v1447 = vsub.f32 %v1397, %v1431
        %v1448 = vsub.f32 %v1398, %v1432
        %v1449 = vmul.f32 %v1441, 1.442695
        %v1450 = vpow.pop %v1449
        %v1451 = vmul.f32 %v1442, 1.442695
        %v1452 = vpow.pop %v1451
        %v1453 = vmul.f32 %v1443, 1.442695
        %v1454 = vpow.pop %v1453
        %v1455 = vmul.f32 %v1444, 1.442695
        %v1456 = vpow.pop %v1455
        %v1457 = vmul.f32 %v1445, 1.442695
        %v1458 = vpow.pop %v1457
        %v1459 = vmul.f32 %v1446, 1.442695
        %v1460 = vpow.pop %v1459
        %v1461 = vmul.f32 %v1447, 1.442695
        %v1462 = vpow.pop %v1461
        %v1463 = vmul.f32 %v1448, 1.442695
        %v1464 = vpow.pop %v1463
        %v1473 = vrot.slane %v1452, 7
        %v1474 = vsel %vm744, %v1473, %v1450
        %v1475 = vrot.slane %v1454, 6
        %v1476 = vsel %vm747, %v1475, %v1474
        %v1477 = vrot.slane %v1456, 5
        %v1478 = vsel %vm750, %v1477, %v1476
        %v1479 = vrot.slane %v1458, 4
        %v1480 = vsel %vm753, %v1479, %v1478
        %v1481 = vrot.slane %v1460, 3
        %v1482 = vsel %vm756, %v1481, %v1480
        %v1483 = vrot.slane %v1462, 2
        %v1484 = vsel %vm759, %v1483, %v1482
        %v1485 = vrot.slane %v1464, 1
        %v1486 = vsel %vm762, %v1485, %v1484
        %v1488 = vsel %vm393, %v1486, 0.0
        %1489 = vadd.xlane.f32.xlu0 %v1488
        %v1490 = vpop.xlane.xlu0 %1489
        %v1491 = vpack.c.bf16 %v1450, %v1450
        %v1492 = vpack.c.bf16 %v1452, %v1452
        %v1493 = vpack.c.bf16 %v1454, %v1454
        %v1494 = vpack.c.bf16 %v1456, %v1456
        %v1495 = vpack.c.bf16 %v1458, %v1458
        %v1496 = vpack.c.bf16 %v1460, %v1460
        %v1497 = vpack.c.bf16 %v1462, %v1462
        %v1498 = vpack.c.bf16 %v1464, %v1464
        %v1507 = vunpack.c.l.b16 %v1491
        %v1508 = vunpack.c.l.b16 %v1492
        %v1509 = vunpack.c.l.b16 %v1493
        %v1510 = vunpack.c.l.b16 %v1494
        %v1511 = vunpack.c.l.b16 %v1495
        %v1512 = vunpack.c.l.b16 %v1496
        %v1513 = vunpack.c.l.b16 %v1497
        %v1514 = vunpack.c.l.b16 %v1498
        %v1515 = vrot.slane %v1508, 7
        %v1516 = vsel %vm744, %v1515, %v1507
        %v1517 = vrot.slane %v1509, 6
        %v1518 = vsel %vm747, %v1517, %v1516
        %v1519 = vrot.slane %v1510, 5
        %v1520 = vsel %vm750, %v1519, %v1518
        %v1521 = vrot.slane %v1511, 4
        %v1522 = vsel %vm753, %v1521, %v1520
        %v1523 = vrot.slane %v1512, 3
        %v1524 = vsel %vm756, %v1523, %v1522
        %v1525 = vrot.slane %v1513, 2
        %v1526 = vsel %vm759, %v1525, %v1524
        %v1527 = vrot.slane %v1514, 1
        %v1528 = vsel %vm762, %v1527, %v1526
        %v1529 = vpack.c.b16 %v1528, %v1528
        %1530 = vrot.lane.b32.xlu0 %v498, 112
        %v1531 = vpop.permute.xlu0 %1530
        %v1534 = vsel %vm393, %v1529, 0
        %1536 = vmatprep.subr.bf16.mxu0 0
        %1537 = vmatpush1.bf16.msra.mxu0 %v1531
        %1538 = vmatprep.subr.bf16.mxu0 0
        %1539 = vmatpush1.bf16.msra.mxu0 0
        %1540 = vmatprep.subr.bf16.mxu0 0
        %1541 = vmatpush1.bf16.msra.mxu0 0
        %1542 = vmatprep.subr.bf16.mxu0 0
        %1543 = vmatpush1.bf16.msra.mxu0 0
        %1544 = vmatprep.subr.bf16.mxu0 0
        %1545 = vmatpush1.bf16.msra.mxu0 0
        %1546 = vmatprep.subr.bf16.mxu0 0
        %1547 = vmatpush1.bf16.msra.mxu0 0
        %1548 = vmatprep.subr.bf16.mxu0 0
        %1549 = vmatpush1.bf16.msra.mxu0 0
        %1550 = vmatprep.subr.bf16.mxu0 0
        %1551 = vmatpush1.bf16.msra.mxu0 0
        %1552 = vmatprep.subr.bf16.mxu0 0
        %1553 = vmatpush1.bf16.msra.mxu0 0
        %1554 = vmatprep.subr.bf16.mxu0 0
        %1555 = vmatpush1.bf16.msra.mxu0 0
        %1556 = vmatprep.subr.bf16.mxu0 0
        %1557 = vmatpush1.bf16.msra.mxu0 0
        %1558 = vmatprep.subr.bf16.mxu0 0
        %1559 = vmatpush1.bf16.msra.mxu0 0
        %1560 = vmatprep.subr.bf16.mxu0 0
        %1561 = vmatpush1.bf16.msra.mxu0 0
        %1562 = vmatprep.subr.bf16.mxu0 0
        %1563 = vmatpush1.bf16.msra.mxu0 0
        %1564 = vmatprep.subr.bf16.mxu0 0
        %1565 = vmatpush1.bf16.msra.mxu0 0
        %1566 = vmatprep.subr.bf16.mxu0 0
        %1567 = vmatpush1.bf16.msra.mxu0 0
        %1568 = vmatprep.mubr.bf16.mxu0 0
        %1569 = vmatmul.mubr.bf16.gmra.mrb[0].mxu0 %v1534
        %v1570 = vpop.f32.mrb[0].mxu0
        %v1571 = vadd.f32 0.0, %v1570
        %v1572 = vpop.f32.mrb[0].mxu0
        %v1573 = vpop.f32.mrb[0].mxu0
        %v1574 = vpop.f32.mrb[0].mxu0
        %1575 = vdwg.mxu0
        %v1576 = vrcp.pop %v1490
        %v1577 = vmul.f32 %v1571, %v1576
        %s1579 = sor.u32 256, 24
        %1580 = vbcast.lane.c.b16.xlu0 %v546, %s1579
        %v1581 = vpop.permute.xlu0 %1580
        %s1583 = sor.u32 256, 24
        %1584 = vbcast.lane.c.b16.xlu0 %v556, %s1583
        %v1585 = vpop.permute.xlu0 %1584
        %s1587 = sor.u32 256, 24
        %1588 = vbcast.lane.c.b16.xlu0 %v563, %s1587
        %v1589 = vpop.permute.xlu0 %1588
        %s1591 = sor.u32 256, 24
        %1592 = vbcast.lane.c.b16.xlu0 %v570, %s1591
        %v1593 = vpop.permute.xlu0 %1592
        %s1595 = sor.u32 256, 24
        %1596 = vbcast.lane.c.b16.xlu0 %v577, %s1595
        %v1597 = vpop.permute.xlu0 %1596
        %s1599 = sor.u32 256, 24
        %1600 = vbcast.lane.c.b16.xlu0 %v584, %s1599
        %v1601 = vpop.permute.xlu0 %1600
        %s1603 = sor.u32 256, 24
        %1604 = vbcast.lane.c.b16.xlu0 %v591, %s1603
        %v1605 = vpop.permute.xlu0 %1604
        %s1607 = sor.u32 256, 24
        %1608 = vbcast.lane.c.b16.xlu0 %v598, %s1607
        %v1609 = vpop.permute.xlu0 %1608
        %v1611 = vrot.slane %v532, 4
        %v1613 = vadd.bf16 %v1581, %v1611
        %v1614 = vadd.bf16 %v1585, %v1611
        %v1615 = vadd.bf16 %v1589, %v1611
        %v1616 = vadd.bf16 %v1593, %v1611
        %v1617 = vadd.bf16 %v1597, %v1611
        %v1618 = vadd.bf16 %v1601, %v1611
        %v1619 = vadd.bf16 %v1605, %v1611
        %v1620 = vadd.bf16 %v1609, %v1611
        %vm1621 = vcmp.gt.bf16.partialorder %v1613, 0
        %vm1622 = vcmp.gt.bf16.partialorder %v1614, 0
        %vm1623 = vcmp.gt.bf16.partialorder %v1615, 0
        %vm1624 = vcmp.gt.bf16.partialorder %v1616, 0
        %vm1625 = vcmp.gt.bf16.partialorder %v1617, 0
        %vm1626 = vcmp.gt.bf16.partialorder %v1618, 0
        %vm1627 = vcmp.gt.bf16.partialorder %v1619, 0
        %vm1628 = vcmp.gt.bf16.partialorder %v1620, 0
        %v1629 = vmul.bf16 %v1613, 1045249613
        %v1630 = vmul.bf16 %v1614, 1045249613
        %v1631 = vmul.bf16 %v1615, 1045249613
        %v1632 = vmul.bf16 %v1616, 1045249613
        %v1633 = vmul.bf16 %v1617, 1045249613
        %v1634 = vmul.bf16 %v1618, 1045249613
        %v1635 = vmul.bf16 %v1619, 1045249613
        %v1636 = vmul.bf16 %v1620, 1045249613
        %v1637 = vsel %vm1621, %v1613, %v1629
        %v1638 = vsel %vm1622, %v1614, %v1630
        %v1639 = vsel %vm1623, %v1615, %v1631
        %v1640 = vsel %vm1624, %v1616, %v1632
        %v1641 = vsel %vm1625, %v1617, %v1633
        %v1642 = vsel %vm1626, %v1618, %v1634
        %v1643 = vsel %vm1627, %v1619, %v1635
        %v1644 = vsel %vm1628, %v1620, %v1636
        %v1645 = vunpack.c.l.bf16 %v1637
        %v1646 = vunpack.c.l.bf16 %v1638
        %v1647 = vunpack.c.l.bf16 %v1639
        %v1648 = vunpack.c.l.bf16 %v1640
        %v1649 = vunpack.c.l.bf16 %v1641
        %v1650 = vunpack.c.l.bf16 %v1642
        %v1651 = vunpack.c.l.bf16 %v1643
        %v1652 = vunpack.c.l.bf16 %v1644
        %1654 = vset.pattern.permute.xlu0 0
        %1655 = vperm.xlu0 %1654, %v539
        %v1656 = vpop.permute.xlu0 %1655
        %v1658 = vmul.f32 %v1645, %v1656
        %v1659 = vmul.f32 %v1646, %v1656
        %v1660 = vmul.f32 %v1647, %v1656
        %v1661 = vmul.f32 %v1648, %v1656
        %v1662 = vmul.f32 %v1649, %v1656
        %v1663 = vmul.f32 %v1650, %v1656
        %v1664 = vmul.f32 %v1651, %v1656
        %v1665 = vmul.f32 %v1652, %v1656
        %v1666 = vsel %vm393, %v1658, 0.0
        %v1667 = vrot.slane %v1666, 4
        %v1668 = vadd.f32 %v1666, %v1667
        %v1669 = vrot.slane %v1668, 2
        %v1670 = vadd.f32 %v1668, %v1669
        %v1671 = vrot.slane %v1670, 1
        %v1672 = vadd.f32 %v1670, %v1671
        %v1673 = vsel %vm393, %v1659, 0.0
        %v1674 = vrot.slane %v1673, 4
        %v1675 = vadd.f32 %v1673, %v1674
        %v1676 = vrot.slane %v1675, 2
        %v1677 = vadd.f32 %v1675, %v1676
        %v1678 = vrot.slane %v1677, 1
        %v1679 = vadd.f32 %v1677, %v1678
        %v1680 = vsel %vm393, %v1660, 0.0
        %v1681 = vrot.slane %v1680, 4
        %v1682 = vadd.f32 %v1680, %v1681
        %v1683 = vrot.slane %v1682, 2
        %v1684 = vadd.f32 %v1682, %v1683
        %v1685 = vrot.slane %v1684, 1
        %v1686 = vadd.f32 %v1684, %v1685
        %v1687 = vsel %vm393, %v1661, 0.0
        %v1688 = vrot.slane %v1687, 4
        %v1689 = vadd.f32 %v1687, %v1688
        %v1690 = vrot.slane %v1689, 2
        %v1691 = vadd.f32 %v1689, %v1690
        %v1692 = vrot.slane %v1691, 1
        %v1693 = vadd.f32 %v1691, %v1692
        %v1694 = vsel %vm393, %v1662, 0.0
        %v1695 = vrot.slane %v1694, 4
        %v1696 = vadd.f32 %v1694, %v1695
        %v1697 = vrot.slane %v1696, 2
        %v1698 = vadd.f32 %v1696, %v1697
        %v1699 = vrot.slane %v1698, 1
        %v1700 = vadd.f32 %v1698, %v1699
        %v1701 = vsel %vm393, %v1663, 0.0
        %v1702 = vrot.slane %v1701, 4
        %v1703 = vadd.f32 %v1701, %v1702
        %v1704 = vrot.slane %v1703, 2
        %v1705 = vadd.f32 %v1703, %v1704
        %v1706 = vrot.slane %v1705, 1
        %v1707 = vadd.f32 %v1705, %v1706
        %v1708 = vsel %vm393, %v1664, 0.0
        %v1709 = vrot.slane %v1708, 4
        %v1710 = vadd.f32 %v1708, %v1709
        %v1711 = vrot.slane %v1710, 2
        %v1712 = vadd.f32 %v1710, %v1711
        %v1713 = vrot.slane %v1712, 1
        %v1714 = vadd.f32 %v1712, %v1713
        %v1715 = vsel %vm393, %v1665, 0.0
        %v1716 = vrot.slane %v1715, 4
        %v1717 = vadd.f32 %v1715, %v1716
        %v1718 = vrot.slane %v1717, 2
        %v1719 = vadd.f32 %v1717, %v1718
        %v1720 = vrot.slane %v1719, 1
        %v1721 = vadd.f32 %v1719, %v1720
        %v1722 = vadd.f32 %v1672, %v535
        %v1723 = vadd.f32 %v1679, %v712
        %v1724 = vadd.f32 %v1686, %v713
        %v1725 = vadd.f32 %v1693, %v714
        %v1726 = vadd.f32 %v1700, %v715
        %v1727 = vadd.f32 %v1707, %v716
        %v1728 = vadd.f32 %v1714, %v717
        %v1729 = vadd.f32 %v1721, %v718
        %v1738 = vrot.slane %v1723, 7
        %v1739 = vsel %vm744, %v1738, %v1722
        %v1740 = vrot.slane %v1724, 6
        %v1741 = vsel %vm747, %v1740, %v1739
        %v1742 = vrot.slane %v1725, 5
        %v1743 = vsel %vm750, %v1742, %v1741
        %v1744 = vrot.slane %v1726, 4
        %v1745 = vsel %vm753, %v1744, %v1743
        %v1746 = vrot.slane %v1727, 3
        %v1747 = vsel %vm756, %v1746, %v1745
        %v1748 = vrot.slane %v1728, 2
        %v1749 = vsel %vm759, %v1748, %v1747
        %v1750 = vrot.slane %v1729, 1
        %v1751 = vsel %vm762, %v1750, %v1749
        %v1753 = vsel %vm393, %v1751, -inf
        %1754 = vmax.xlane.f32.xlu0 %v1753
        %v1755 = vpop.xlane.xlu0 %1754
        %v1757 = vrot.slane %v1755, 1
        %v1758 = vrot.slane %v1755, 2
        %v1759 = vrot.slane %v1755, 3
        %v1760 = vrot.slane %v1755, 4
        %v1761 = vrot.slane %v1755, 5
        %v1762 = vrot.slane %v1755, 6
        %v1763 = vrot.slane %v1755, 7
        %v1772 = vsub.f32 %v1722, %v1755
        %v1773 = vsub.f32 %v1723, %v1757
        %v1774 = vsub.f32 %v1724, %v1758
        %v1775 = vsub.f32 %v1725, %v1759
        %v1776 = vsub.f32 %v1726, %v1760
        %v1777 = vsub.f32 %v1727, %v1761
        %v1778 = vsub.f32 %v1728, %v1762
        %v1779 = vsub.f32 %v1729, %v1763
        %v1780 = vmul.f32 %v1772, 1.442695
        %v1781 = vpow.pop %v1780
        %v1782 = vmul.f32 %v1773, 1.442695
        %v1783 = vpow.pop %v1782
        %v1784 = vmul.f32 %v1774, 1.442695
        %v1785 = vpow.pop %v1784
        %v1786 = vmul.f32 %v1775, 1.442695
        %v1787 = vpow.pop %v1786
        %v1788 = vmul.f32 %v1776, 1.442695
        %v1789 = vpow.pop %v1788
        %v1790 = vmul.f32 %v1777, 1.442695
        %v1791 = vpow.pop %v1790
        %v1792 = vmul.f32 %v1778, 1.442695
        %v1793 = vpow.pop %v1792
        %v1794 = vmul.f32 %v1779, 1.442695
        %v1795 = vpow.pop %v1794
        %v1804 = vrot.slane %v1783, 7
        %v1805 = vsel %vm744, %v1804, %v1781
        %v1806 = vrot.slane %v1785, 6
        %v1807 = vsel %vm747, %v1806, %v1805
        %v1808 = vrot.slane %v1787, 5
        %v1809 = vsel %vm750, %v1808, %v1807
        %v1810 = vrot.slane %v1789, 4
        %v1811 = vsel %vm753, %v1810, %v1809
        %v1812 = vrot.slane %v1791, 3
        %v1813 = vsel %vm756, %v1812, %v1811
        %v1814 = vrot.slane %v1793, 2
        %v1815 = vsel %vm759, %v1814, %v1813
        %v1816 = vrot.slane %v1795, 1
        %v1817 = vsel %vm762, %v1816, %v1815
        %v1819 = vsel %vm393, %v1817, 0.0
        %1820 = vadd.xlane.f32.xlu0 %v1819
        %v1821 = vpop.xlane.xlu0 %1820
        %v1822 = vpack.c.bf16 %v1781, %v1781
        %v1823 = vpack.c.bf16 %v1783, %v1783
        %v1824 = vpack.c.bf16 %v1785, %v1785
        %v1825 = vpack.c.bf16 %v1787, %v1787
        %v1826 = vpack.c.bf16 %v1789, %v1789
        %v1827 = vpack.c.bf16 %v1791, %v1791
        %v1828 = vpack.c.bf16 %v1793, %v1793
        %v1829 = vpack.c.bf16 %v1795, %v1795
        %v1838 = vunpack.c.l.b16 %v1822
        %v1839 = vunpack.c.l.b16 %v1823
        %v1840 = vunpack.c.l.b16 %v1824
        %v1841 = vunpack.c.l.b16 %v1825
        %v1842 = vunpack.c.l.b16 %v1826
        %v1843 = vunpack.c.l.b16 %v1827
        %v1844 = vunpack.c.l.b16 %v1828
        %v1845 = vunpack.c.l.b16 %v1829
        %v1846 = vrot.slane %v1839, 7
        %v1847 = vsel %vm744, %v1846, %v1838
        %v1848 = vrot.slane %v1840, 6
        %v1849 = vsel %vm747, %v1848, %v1847
        %v1850 = vrot.slane %v1841, 5
        %v1851 = vsel %vm750, %v1850, %v1849
        %v1852 = vrot.slane %v1842, 4
        %v1853 = vsel %vm753, %v1852, %v1851
        %v1854 = vrot.slane %v1843, 3
        %v1855 = vsel %vm756, %v1854, %v1853
        %v1856 = vrot.slane %v1844, 2
        %v1857 = vsel %vm759, %v1856, %v1855
        %v1858 = vrot.slane %v1845, 1
        %v1859 = vsel %vm762, %v1858, %v1857
        %v1860 = vpack.c.b16 %v1859, %v1859
        %1861 = vrot.lane.b32.xlu0 %v498, 104
        %v1862 = vpop.permute.xlu0 %1861
        %v1865 = vsel %vm393, %v1860, 0
        %1867 = vmatprep.subr.bf16.mxu0 0
        %1868 = vmatpush1.bf16.msra.mxu0 %v1862
        %1869 = vmatprep.subr.bf16.mxu0 0
        %1870 = vmatpush1.bf16.msra.mxu0 0
        %1871 = vmatprep.subr.bf16.mxu0 0
        %1872 = vmatpush1.bf16.msra.mxu0 0
        %1873 = vmatprep.subr.bf16.mxu0 0
        %1874 = vmatpush1.bf16.msra.mxu0 0
        %1875 = vmatprep.subr.bf16.mxu0 0
        %1876 = vmatpush1.bf16.msra.mxu0 0
        %1877 = vmatprep.subr.bf16.mxu0 0
        %1878 = vmatpush1.bf16.msra.mxu0 0
        %1879 = vmatprep.subr.bf16.mxu0 0
        %1880 = vmatpush1.bf16.msra.mxu0 0
        %1881 = vmatprep.subr.bf16.mxu0 0
        %1882 = vmatpush1.bf16.msra.mxu0 0
        %1883 = vmatprep.subr.bf16.mxu0 0
        %1884 = vmatpush1.bf16.msra.mxu0 0
        %1885 = vmatprep.subr.bf16.mxu0 0
        %1886 = vmatpush1.bf16.msra.mxu0 0
        %1887 = vmatprep.subr.bf16.mxu0 0
        %1888 = vmatpush1.bf16.msra.mxu0 0
        %1889 = vmatprep.subr.bf16.mxu0 0
        %1890 = vmatpush1.bf16.msra.mxu0 0
        %1891 = vmatprep.subr.bf16.mxu0 0
        %1892 = vmatpush1.bf16.msra.mxu0 0
        %1893 = vmatprep.subr.bf16.mxu0 0
        %1894 = vmatpush1.bf16.msra.mxu0 0
        %1895 = vmatprep.subr.bf16.mxu0 0
        %1896 = vmatpush1.bf16.msra.mxu0 0
        %1897 = vmatprep.subr.bf16.mxu0 0
        %1898 = vmatpush1.bf16.msra.mxu0 0
        %1899 = vmatprep.mubr.bf16.mxu0 0
        %1900 = vmatmul.mubr.bf16.gmra.mrb[0].mxu0 %v1865
        %v1901 = vpop.f32.mrb[0].mxu0
        %v1902 = vadd.f32 0.0, %v1901
        %v1903 = vpop.f32.mrb[0].mxu0
        %v1904 = vpop.f32.mrb[0].mxu0
        %v1905 = vpop.f32.mrb[0].mxu0
        %1906 = vdwg.mxu0
        %v1907 = vrcp.pop %v1821
        %v1908 = vmul.f32 %v1902, %v1907
        %1910 = vrot.lane.b32.xlu0 %v1249, 8
        %v1911 = vpop.permute.xlu0 %1910
        %1914 = vrot.lane.b32.xlu0 %v1577, 16
        %v1915 = vpop.permute.xlu0 %1914
        %1918 = vrot.lane.b32.xlu0 %v1908, 24
        %v1919 = vpop.permute.xlu0 %1918
        %vm1921 = vcmask 64512
        %v1922 = vsel %vm1921, %v917, %v1911
        %v1923 = vsel %vm393, %v1922, %v1915
        %vm1924 = vcmask 195584
        %v1925 = vsel %vm1924, %v1923, %v1919
        %v1926 = vld [vmem:[%s8] sm:$0x1]
        %v1928 = vlaneseq
        %v1929 = vshrl.u32 %v1928, 7
        %v1930 = vsub.s32 0, %v1929
        %v1931 = vrot.slane %v1926, %v1930
        %v1933 = vadd.f32 %v1925, %v1931
        %v1934 = vmax.f32 %v1933, 0.0
        %vm1935 = vcmask 261120
        %1936 = vst.msk [vmem:[%s364] sm:$0xff] %vm1935, %v1934
        %s1937 = sand.u32 %s232, 1
        %s1938 = scalar_lea.sflag [#allocation4], %s1937
        %s1939 = sand.u32 %s232, 1
        %s1940 = smul.addr %s1939, 8
        %s1941 = scalar_lea.vmem [#allocation7], %s1940
        // Predicated region
        $region65: #{tpu_custom_call.1} parent=55 // pred_check
          %p1942 = pneg %p242
        $region66: #{tpu_custom_call.1} parent=55 // pred_check_branch
          %1944 = sbr.rel (%p1942) target = $region68
        $region67: #{tpu_custom_call.1} parent=55 // pred_region
          %s1946 = ssub.s32 128, 128
          %1947 = vsyncadd %s1938, %s1946
          %s1948 = smul.addr %s25, 128
          %s1949 = scalar_lea.hbm %s9, %s1948
          %s1951 = sshll.u32 %s1941, 4
          %s1952 = int_to_ptr.vmem [resolvable:$true] %s1951
          %1954 = dma.vmem_to_hbm [thread:$0]  %s1952, 128, %s1949, %s1938
        $region68: #{tpu_custom_call.1} parent=55 // pred_fallthru
          _
      $region56: #{tpu_custom_call.1} parent=5 // pred_fallthru
        _
      %p1955 = scmp.le.s32.totalorder 2, %s20
      // Predicated region
      $region69: #{tpu_custom_call.1} parent=5 // pred_check
        %p1956 = pneg %p1955
      $region70: #{tpu_custom_call.1} parent=5 // pred_check_branch
        %1958 = sbr.rel (%p1956) target = $region72
      $region71: #{tpu_custom_call.1} parent=5 // pred_region
        %s1959 = ssub.s32 %s20, 2
        // Predicated region
        $region73: #{tpu_custom_call.1} parent=71 // pred_check
          %p1960 = pneg %p248
        $region74: #{tpu_custom_call.1} parent=71 // pred_check_branch
          %1962 = sbr.rel (%p1960) target = $region76
        $region75: #{tpu_custom_call.1} parent=71 // pred_region
          %s1963 = sand.u32 %s233, 1
          %s1964 = scalar_lea.sflag [#allocation4], %s1963
          %s1965 = sand.u32 %s233, 1
          %s1966 = smul.addr %s1965, 8
          %s1967 = scalar_lea.vmem [#allocation7], %s1966
          %1968 = dma.done %s1964, 128
        $region76: #{tpu_custom_call.1} parent=71 // pred_fallthru
          _
      $region72: #{tpu_custom_call.1} parent=5 // pred_fallthru
        _
    $region6: #{tpu_custom_call.1} parent=1 // loop_footer
      %s24 = sadd.s32 1, %s20
    $region7: #{tpu_custom_call.1} parent=1 // loop_footer_branch
      %19 = sbr.rel target = $region3
    $region8: #{tpu_custom_call.1} parent=1 // loop_exit
      _
    %1969 = vsyncpa [#allocation3], 1
    %s1970 = scalar_lea.sflag [#allocation3], 1
    %1971 = vsyncpa %s1970, 1
    %1972 = vsyncpa [#allocation6], 1
    %1973 = vsyncpa [#allocation4], 1
    %s1974 = scalar_lea.sflag [#allocation4], 1
    %1975 = vsyncpa %s1974, 1

</llo_original>
